<compile_context>
chip_gen: v5e
topology: v5e:2x2
jax: 0.10.0
libtpu: 0.0.40
codegen_flags: <defaults>
</compile_context>

<pallas_src>
import functools

import jax
import jax.numpy as jnp
import numpy as np
from jax import lax
from jax.experimental import pallas as pl
from jax.experimental.pallas import tpu as pltpu


def _attn_predictor_kernel(x_ref, w1_ref, b1_ref, w2_ref, b2_ref, w3_ref, b3_ref,
                           o_ref, *, n_batch, L, c_pad, out_w):
    """One batch-group: fused 3-layer MLP (q & k, all heads) + per-batch q@k^T.

    x_ref : [n_batch*L, Fin]            (f32/bf16 input, cast to bf16 here)
    w*_ref: bf16 packed block-diagonal weights, b*_ref: f32 biases [1, N]
    o_ref : [n_batch, L, out_w]         (out_w = L padded up to 128 lanes)
    """
    # ---- fused MLP over all rows of the batch-group (MXU in bf16, acc f32) ----
    x = x_ref[...].astype(jnp.bfloat16)                                  # [R, Fin]

    h = jnp.dot(x, w1_ref[...], preferred_element_type=jnp.float32) + b1_ref[...]
    h = jnp.maximum(h, 0.0).astype(jnp.bfloat16)                         # [R, H*(q1+k1)]

    h = jnp.dot(h, w2_ref[...], preferred_element_type=jnp.float32) + b2_ref[...]
    h = jnp.maximum(h, 0.0).astype(jnp.bfloat16)                         # [R, H*(q2+k2)]

    qk = jnp.dot(h, w3_ref[...], preferred_element_type=jnp.float32) + b3_ref[...]
    # qk columns: [ q_all (c_pad cols, lane-aligned) | k_all (c_pad cols) ]

    zpad = None
    if out_w > L:
        zpad = jnp.zeros((L, out_w - L), jnp.float32)   # hoisted out of the loop

    # ---- per-batch attention: attn_b[l, m] = sum_{h,d} q[h,l,d] * k[h,m,d] ----
    for b in range(n_batch):                                   # static, unrolled
        rows = slice(b * L, (b + 1) * L)                        # sublane-aligned
        qb = qk[rows, :c_pad].astype(jnp.bfloat16)              # [L, c_pad]
        kb = qk[rows, c_pad:].astype(jnp.bfloat16)              # [L, c_pad]
        attn = lax.dot_general(qb, kb, (((1,), (1,)), ((), ())),
                               preferred_element_type=jnp.float32)       # [L, L]
        if zpad is not None:                                    # lane-dense store
            attn = jnp.concatenate([attn, zpad], axis=-1)       # [L, out_w]
        o_ref[b, :, :] = attn.astype(o_ref.dtype)


def init_params(key, dim, hidden_dim):
    """Deterministic synthetic params. Linear weights stored as [in, out]."""
    q1_out, q2_out = hidden_dim, dim * 32
    k1_out, k2_out = hidden_dim, dim * 32
    shapes = [
        (dim * 64, q1_out), (q1_out,), (q1_out, q2_out), (q2_out,), (q2_out, dim), (dim,),
        (dim * 64, k1_out), (k1_out,), (k1_out, k2_out), (k2_out,), (k2_out, dim), (dim,),
    ]
    keys = jax.random.split(key, len(shapes))
    return tuple(jax.random.normal(kk, s, jnp.float32) * 0.05
                 for kk, s in zip(keys, shapes))


def pack_params(params, *, dim, n_head, lane=128):
    """Fuse q/k paths, expand per head (block-diagonal), 128-align q/k columns.

    Returns ((w1,b1,w2,b2,w3,b3), c_pad) with weights in bf16 (MXU inputs) and
    biases in f32.  Layer-3 columns are [q_all | k_all] with each group padded
    with zero weight/bias columns to `c_pad` (a multiple of 128 lanes).
    """
    params = [jnp.asarray(p, jnp.float32) for p in params]
    wq1, bq1, wq2, bq2, wq3, bq3, wk1, bk1, wk2, bk2, wk3, bk3 = params
    q1, q2 = wq1.shape[1], wq2.shape[1]
    k1, k2 = wk1.shape[1], wk2.shape[1]
    eye_h = jnp.eye(n_head, dtype=jnp.float32)

    # Layer 1: kernel-x feature layout is (t, h, d); route head h's (t, d)
    # features to head h's output block.
    w1f = jnp.concatenate([wq1, wk1], axis=1)                     # [64*dim, q1+k1]
    b1f = jnp.concatenate([bq1, bk1])
    w1e = jnp.einsum('hg,tdc->thdgc', eye_h,
                     w1f.reshape(64, dim, q1 + k1)
                     ).reshape(64 * n_head * dim, n_head * (q1 + k1))
    b1e = jnp.tile(b1f, n_head).reshape(1, -1)

    # Layer 2: block-diag over (q-path | k-path), then block-diag over heads.
    w2f = jnp.zeros((q1 + k1, q2 + k2), jnp.float32)
    w2f = w2f.at[:q1, :q2].set(wq2).at[q1:, q2:].set(wk2)
    b2f = jnp.concatenate([bq2, bk2])
    w2e = jnp.einsum('hg,ac->hagc', eye_h, w2f
                     ).reshape(n_head * (q1 + k1), n_head * (q2 + k2))
    b2e = jnp.tile(b2f, n_head).reshape(1, -1)

    # Layer 3: [q_all | k_all] stacked over heads; each group zero-padded to a
    # multiple of 128 lanes so the in-kernel split is vreg-aligned.
    c_qk = n_head * dim
    c_pad = max(lane, ((c_qk + lane - 1) // lane) * lane)
    pad_cols = c_pad - c_qk
    w3fq = jnp.concatenate([wq3, jnp.zeros((k2, dim), jnp.float32)], axis=0)
    w3fk = jnp.concatenate([jnp.zeros((q2, dim), jnp.float32), wk3], axis=0)
    w3qe = jnp.einsum('hg,ac->hagc', eye_h, w3fq).reshape(n_head * (q2 + k2), c_qk)
    w3ke = jnp.einsum('hg,ac->hagc', eye_h, w3fk).reshape(n_head * (q2 + k2), c_qk)
    w3qe = jnp.pad(w3qe, ((0, 0), (0, pad_cols)))
    w3ke = jnp.pad(w3ke, ((0, 0), (0, pad_cols)))
    w3e = jnp.concatenate([w3qe, w3ke], axis=1)                   # [H*(q2+k2), 2*c_pad]
    b3q = jnp.pad(jnp.tile(bq3, n_head), (0, pad_cols))           # pad bias = 0 so
    b3k = jnp.pad(jnp.tile(bk3, n_head), (0, pad_cols))           # pad cols stay 0
    b3e = jnp.concatenate([b3q, b3k]).reshape(1, -1)

    packed = (w1e.astype(jnp.bfloat16), b1e,
              w2e.astype(jnp.bfloat16), b2e,
              w3e.astype(jnp.bfloat16), b3e)
    return packed, c_pad


def _choose_batch_block(bsz, L, row_bytes, target_rows=256, max_x_bytes=8 << 20):
    """Pick how many batch elements to fold into the matmul M dimension."""
    bb = min(bsz, max(1, -(-target_rows // L)))              # aim for >=256 MXU rows
    while bb > 1 and bb * L * row_bytes > max_x_bytes:       # guard the x VMEM tile
        bb -= 1
    while bsz % bb:                                          # avoid a ragged last step
        bb -= 1
    if bsz // bb < 2 and bb % 2 == 0 and (bb // 2) * L >= 128:
        bb //= 2                                             # keep >=2 steps for v7x's 2 TCs
    return bb


def prunable_attn_predictor_infer(hidden_states, params, *, dim, n_head):
    bsz, q_len, hid = hidden_states.shape
    assert hid == dim * n_head, "input hidden size must equal dim * n_head"
    assert q_len % 64 == 0, "seq len must be a multiple of 64"
    L = q_len // 64
    Fin = 64 * hid

    packed, c_pad = pack_params(params, dim=dim, n_head=n_head)

    # Pure reshape — no transpose, no dtype cast, no extra HBM copy of x.
    x2d = hidden_states.reshape(bsz * L, Fin)

    B_blk = _choose_batch_block(bsz, L, Fin * x2d.dtype.itemsize)
    R = B_blk * L
    Lp = ((L + 127) // 128) * 128          # lane-dense output width (>= 128)
    grid = (bsz // B_blk,)

    def _const_spec(a):
        nd = a.ndim
        return pl.BlockSpec(a.shape, lambda g, _nd=nd: (0,) * _nd)

    kernel = functools.partial(_attn_predictor_kernel,
                               n_batch=B_blk, L=L, c_pad=c_pad, out_w=Lp)

    out_padded = pl.pallas_call(
        kernel,
        out_shape=jax.ShapeDtypeStruct((bsz, L, Lp), jnp.float32),
        grid_spec=pltpu.PrefetchScalarGridSpec(
            num_scalar_prefetch=0,
            grid=grid,
            in_specs=[pl.BlockSpec((R, Fin), lambda g: (g, 0))]
                     + [_const_spec(a) for a in packed],
            out_specs=pl.BlockSpec((B_blk, L, Lp), lambda g: (g, 0, 0)),
        ),
        compiler_params=pltpu.CompilerParams(
            dimension_semantics=("parallel",),
            vmem_limit_bytes=64 * 1024 * 1024,
        ),
    )(x2d, *packed)

    return out_padded[:, :, :L] if Lp != L else out_padded


def reference(hidden_states, params, *, dim, n_head, mxu_dtype=jnp.float32):
    """Pure-JAX reference mirroring the PyTorch forward.

    mxu_dtype=float32  -> exact module semantics.
    mxu_dtype=bfloat16 -> mirrors the kernel's bf16-MXU / f32-accumulate precision.
    """
    bsz, q_len, hid = hidden_states.shape
    d = hid // n_head
    x = hidden_states.astype(jnp.float32)
    x = x.reshape(bsz, q_len, n_head, d).transpose(0, 2, 1, 3)
    x = x.reshape(bsz, n_head, q_len // 64, 64 * d)
    wq1, bq1, wq2, bq2, wq3, bq3, wk1, bk1, wk2, bk2, wk3, bk3 = params

    def mm(a, w):
        a2 = a.reshape(-1, a.shape[-1]).astype(mxu_dtype)
        o = jnp.dot(a2, w.astype(mxu_dtype), preferred_element_type=jnp.float32)
        return o.reshape(a.shape[:-1] + (w.shape[-1],))

    relu = lambda v: jnp.maximum(v, 0.0)
    q = relu(mm(x, wq1) + bq1)
    q = relu(mm(q, wq2) + bq2)
    q = mm(q, wq3) + bq3
    k = relu(mm(x, wk1) + bk1)
    k = relu(mm(k, wk2) + bk2)
    k = mm(k, wk3) + bk3
    attn = jnp.einsum('bhld,bhmd->bhlm',
                      q.astype(mxu_dtype), k.astype(mxu_dtype),
                      preferred_element_type=jnp.float32)
    return attn.sum(axis=1)


if __name__ == "__main__":
    # Small shapes consistent with the module: dim=4, hidden_dim=32, n_head=4,
    # batch=2, seq=512 (multiple of 64) -> L = 8 blocks of 64 tokens.
    dim, hidden_dim, n_head = 4, 32, 4
    bsz, q_len = 2, 512

    key = jax.random.PRNGKey(0)
    k_x, k_p = jax.random.split(key)
    hidden_states = jax.random.normal(k_x, (bsz, q_len, n_head * dim), jnp.float32)
    params = init_params(k_p, dim, hidden_dim)

    out = prunable_attn_predictor_infer(hidden_states, params, dim=dim, n_head=n_head)
    out = jax.block_until_ready(out)

    # Strong check against a reference that mirrors the kernel's bf16-MXU precision
    # (validates the fusion / block-diagonal packing / head-sum folding exactly).
    ref_bf16 = jax.block_until_ready(
        reference(hidden_states, params, dim=dim, n_head=n_head, mxu_dtype=jnp.bfloat16))
    np.testing.assert_allclose(np.asarray(out), np.asarray(ref_bf16), rtol=2e-2, atol=5e-3)

    # Loose check against the pure-f32 module semantics (tolerance widened because
    # the kernel feeds the MXU bf16 inputs, per the performance review).
    ref_f32 = jax.block_until_ready(
        reference(hidden_states, params, dim=dim, n_head=n_head, mxu_dtype=jnp.float32))
    np.testing.assert_allclose(np.asarray(out), np.asarray(ref_f32), rtol=1e-1, atol=5e-2)

    print("KERNEL_OK")
</pallas_src>

<mosaic_0001>
module attributes {stable_mosaic.version = 11 : i64} {
  func.func @_attn_predictor_kernel(%arg0: i32, %arg1: memref<16x1024xf32, #tpu.memory_space<vmem>>, %arg2: memref<1024x256xbf16, #tpu.memory_space<vmem>>, %arg3: memref<1x256xf32, #tpu.memory_space<vmem>>, %arg4: memref<256x1024xbf16, #tpu.memory_space<vmem>>, %arg5: memref<1x1024xf32, #tpu.memory_space<vmem>>, %arg6: memref<1024x256xbf16, #tpu.memory_space<vmem>>, %arg7: memref<1x256xf32, #tpu.memory_space<vmem>>, %arg8: memref<2x8x128xf32, #tpu.memory_space<vmem>>) attributes {dimension_semantics = [#tpu.dimension_semantics<parallel>], iteration_bounds = array<i64: 1>, scalar_prefetch = 0 : i64, scratch_operands = 0 : i64, tpu.core_type = #tpu.core_type<tc>, window_params = [{transform_indices = @transform_0, window_bounds = array<i64: 16, 1024>}, {pipeline_mode = #tpu.pipeline_mode<synchronous>, transform_indices = @transform_1, window_bounds = array<i64: 1024, 256>}, {pipeline_mode = #tpu.pipeline_mode<synchronous>, transform_indices = @transform_2, window_bounds = array<i64: 1, 256>}, {pipeline_mode = #tpu.pipeline_mode<synchronous>, transform_indices = @transform_3, window_bounds = array<i64: 256, 1024>}, {pipeline_mode = #tpu.pipeline_mode<synchronous>, transform_indices = @transform_4, window_bounds = array<i64: 1, 1024>}, {pipeline_mode = #tpu.pipeline_mode<synchronous>, transform_indices = @transform_5, window_bounds = array<i64: 1024, 256>}, {pipeline_mode = #tpu.pipeline_mode<synchronous>, transform_indices = @transform_6, window_bounds = array<i64: 1, 256>}, {transform_indices = @transform_7, window_bounds = array<i64: 2, 8, 128>}]} {
    %c0 = arith.constant 0 : index
    %c0_0 = arith.constant 0 : index
    %0 = vector.load %arg1[%c0, %c0_0] : memref<16x1024xf32, #tpu.memory_space<vmem>>, vector<16x1024xf32>
    %1 = arith.truncf %0 : vector<16x1024xf32> to vector<16x1024xbf16>
    %c0_1 = arith.constant 0 : index
    %c0_2 = arith.constant 0 : index
    %2 = vector.load %arg2[%c0_1, %c0_2] : memref<1024x256xbf16, #tpu.memory_space<vmem>>, vector<1024x256xbf16>
    %cst = arith.constant dense<0.000000e+00> : vector<16x256xf32>
    %3 = tpu.matmul %1, %2, %cst {dimension_numbers = #tpu.dot_dimension_numbers<[1], [0], [0], [1], [0, 0, 1, 1], [], []>} : vector<16x1024xbf16>, vector<1024x256xbf16>, vector<16x256xf32> -> vector<16x256xf32>
    %c0_3 = arith.constant 0 : index
    %c0_4 = arith.constant 0 : index
    %4 = vector.load %arg3[%c0_3, %c0_4] : memref<1x256xf32, #tpu.memory_space<vmem>>, vector<1x256xf32>
    %5 = vector.broadcast %4 : vector<1x256xf32> to vector<16x256xf32>
    %6 = arith.addf %3, %5 : vector<16x256xf32>
    %cst_5 = arith.constant 0.000000e+00 : f32
    %7 = vector.broadcast %cst_5 : f32 to vector<16x256xf32>
    %8 = arith.maximumf %6, %7 : vector<16x256xf32>
    %9 = arith.truncf %8 : vector<16x256xf32> to vector<16x256xbf16>
    %c0_6 = arith.constant 0 : index
    %c0_7 = arith.constant 0 : index
    %10 = vector.load %arg4[%c0_6, %c0_7] : memref<256x1024xbf16, #tpu.memory_space<vmem>>, vector<256x1024xbf16>
    %cst_8 = arith.constant dense<0.000000e+00> : vector<16x1024xf32>
    %11 = tpu.matmul %9, %10, %cst_8 {dimension_numbers = #tpu.dot_dimension_numbers<[1], [0], [0], [1], [0, 0, 1, 1], [], []>} : vector<16x256xbf16>, vector<256x1024xbf16>, vector<16x1024xf32> -> vector<16x1024xf32>
    %c0_9 = arith.constant 0 : index
    %c0_10 = arith.constant 0 : index
    %12 = vector.load %arg5[%c0_9, %c0_10] : memref<1x1024xf32, #tpu.memory_space<vmem>>, vector<1x1024xf32>
    %13 = vector.broadcast %12 : vector<1x1024xf32> to vector<16x1024xf32>
    %14 = arith.addf %11, %13 : vector<16x1024xf32>
    %cst_11 = arith.constant 0.000000e+00 : f32
    %15 = vector.broadcast %cst_11 : f32 to vector<16x1024xf32>
    %16 = arith.maximumf %14, %15 : vector<16x1024xf32>
    %17 = arith.truncf %16 : vector<16x1024xf32> to vector<16x1024xbf16>
    %c0_12 = arith.constant 0 : index
    %c0_13 = arith.constant 0 : index
    %18 = vector.load %arg6[%c0_12, %c0_13] : memref<1024x256xbf16, #tpu.memory_space<vmem>>, vector<1024x256xbf16>
    %cst_14 = arith.constant dense<0.000000e+00> : vector<16x256xf32>
    %19 = tpu.matmul %17, %18, %cst_14 {dimension_numbers = #tpu.dot_dimension_numbers<[1], [0], [0], [1], [0, 0, 1, 1], [], []>} : vector<16x1024xbf16>, vector<1024x256xbf16>, vector<16x256xf32> -> vector<16x256xf32>
    %c0_15 = arith.constant 0 : index
    %c0_16 = arith.constant 0 : index
    %20 = vector.load %arg7[%c0_15, %c0_16] : memref<1x256xf32, #tpu.memory_space<vmem>>, vector<1x256xf32>
    %21 = vector.broadcast %20 : vector<1x256xf32> to vector<16x256xf32>
    %22 = arith.addf %19, %21 : vector<16x256xf32>
    %cst_17 = arith.constant 0.000000e+00 : f32
    %23 = vector.broadcast %cst_17 : f32 to vector<8x120xf32>
    %24 = vector.extract_strided_slice %22 {offsets = [0, 0], sizes = [8, 128], strides = [1, 1]} : vector<16x256xf32> to vector<8x128xf32>
    %25 = arith.truncf %24 : vector<8x128xf32> to vector<8x128xbf16>
    %26 = vector.extract_strided_slice %22 {offsets = [0, 128], sizes = [8, 128], strides = [1, 1]} : vector<16x256xf32> to vector<8x128xf32>
    %27 = arith.truncf %26 : vector<8x128xf32> to vector<8x128xbf16>
    %cst_18 = arith.constant dense<0.000000e+00> : vector<8x8xf32>
    %28 = tpu.matmul %25, %27, %cst_18 {dimension_numbers = #tpu.dot_dimension_numbers<[1], [1], [0], [0], [0, 0, 1, 0], [], []>} : vector<8x128xbf16>, vector<8x128xbf16>, vector<8x8xf32> -> vector<8x8xf32>
    %29 = tpu.concatenate %28, %23 in 1 : vector<8x8xf32>, vector<8x120xf32> -> vector<8x128xf32>
    %c0_19 = arith.constant 0 : index
    %c0_20 = arith.constant 0 : index
    %c0_21 = arith.constant 0 : index
    %30 = vector.load %arg8[%c0_19, %c0_20, %c0_21] : memref<2x8x128xf32, #tpu.memory_space<vmem>>, vector<1x8x128xf32>
    %31 = vector.shape_cast %30 : vector<1x8x128xf32> to vector<8x128xf32>
    %32 = vector.shape_cast %29 : vector<8x128xf32> to vector<1x8x128xf32>
    tpu.vector_store %arg8[%c0_19, %c0_20, %c0_21], %32 {strides = array<i32>} : memref<2x8x128xf32, #tpu.memory_space<vmem>>, vector<1x8x128xf32>,
    %33 = vector.extract_strided_slice %22 {offsets = [8, 0], sizes = [8, 128], strides = [1, 1]} : vector<16x256xf32> to vector<8x128xf32>
    %34 = arith.truncf %33 : vector<8x128xf32> to vector<8x128xbf16>
    %35 = vector.extract_strided_slice %22 {offsets = [8, 128], sizes = [8, 128], strides = [1, 1]} : vector<16x256xf32> to vector<8x128xf32>
    %36 = arith.truncf %35 : vector<8x128xf32> to vector<8x128xbf16>
    %cst_22 = arith.constant dense<0.000000e+00> : vector<8x8xf32>
    %37 = tpu.matmul %34, %36, %cst_22 {dimension_numbers = #tpu.dot_dimension_numbers<[1], [1], [0], [0], [0, 0, 1, 0], [], []>} : vector<8x128xbf16>, vector<8x128xbf16>, vector<8x8xf32> -> vector<8x8xf32>
    %38 = tpu.concatenate %37, %23 in 1 : vector<8x8xf32>, vector<8x120xf32> -> vector<8x128xf32>
    %c1 = arith.constant 1 : index
    %c0_23 = arith.constant 0 : index
    %c0_24 = arith.constant 0 : index
    %39 = vector.load %arg8[%c1, %c0_23, %c0_24] : memref<2x8x128xf32, #tpu.memory_space<vmem>>, vector<1x8x128xf32>
    %40 = vector.shape_cast %39 : vector<1x8x128xf32> to vector<8x128xf32>
    %41 = vector.shape_cast %38 : vector<8x128xf32> to vector<1x8x128xf32>
    tpu.vector_store %arg8[%c1, %c0_23, %c0_24], %41 {strides = array<i32>} : memref<2x8x128xf32, #tpu.memory_space<vmem>>, vector<1x8x128xf32>,
    return
  }
  func.func @transform_0(%arg0: i32) -> (i32, i32) {
    %c0_i32 = arith.constant 0 : i32
    %c0_i32_0 = arith.constant 0 : i32
    return %arg0, %c0_i32 : i32, i32
  }
  func.func @transform_1(%arg0: i32) -> (i32, i32) {
    %c0_i32 = arith.constant 0 : i32
    %c0_i32_0 = arith.constant 0 : i32
    %c0_i32_1 = arith.constant 0 : i32
    return %c0_i32, %c0_i32_0 : i32, i32
  }
  func.func @transform_2(%arg0: i32) -> (i32, i32) {
    %c0_i32 = arith.constant 0 : i32
    %c0_i32_0 = arith.constant 0 : i32
    %c0_i32_1 = arith.constant 0 : i32
    return %c0_i32, %c0_i32_0 : i32, i32
  }
  func.func @transform_3(%arg0: i32) -> (i32, i32) {
    %c0_i32 = arith.constant 0 : i32
    %c0_i32_0 = arith.constant 0 : i32
    %c0_i32_1 = arith.constant 0 : i32
    return %c0_i32, %c0_i32_0 : i32, i32
  }
  func.func @transform_4(%arg0: i32) -> (i32, i32) {
    %c0_i32 = arith.constant 0 : i32
    %c0_i32_0 = arith.constant 0 : i32
    %c0_i32_1 = arith.constant 0 : i32
    return %c0_i32, %c0_i32_0 : i32, i32
  }
  func.func @transform_5(%arg0: i32) -> (i32, i32) {
    %c0_i32 = arith.constant 0 : i32
    %c0_i32_0 = arith.constant 0 : i32
    %c0_i32_1 = arith.constant 0 : i32
    return %c0_i32, %c0_i32_0 : i32, i32
  }
  func.func @transform_6(%arg0: i32) -> (i32, i32) {
    %c0_i32 = arith.constant 0 : i32
    %c0_i32_0 = arith.constant 0 : i32
    %c0_i32_1 = arith.constant 0 : i32
    return %c0_i32, %c0_i32_0 : i32, i32
  }
  func.func @transform_7(%arg0: i32) -> (i32, i32, i32) {
    %c0_i32 = arith.constant 0 : i32
    %c0_i32_0 = arith.constant 0 : i32
    %c0_i32_1 = arith.constant 0 : i32
    return %arg0, %c0_i32, %c0_i32_0 : i32, i32, i32
  }
}

</mosaic_0001>

<llo_original>
// kernel: tpu_custom_call.1
$region0: #{tpu_custom_call.1}
  #allocation0 [shape = 'u32[]', space=smem, size = 0x4, offset = 0x4, fixed_abs, tag = 'smem constant byte address 0x4 - core index']
  #allocation1 [shape = 'u32[72,128]{1,0:T(1,128)}', space=vmem, size = 0x9000, scoped, tag = 'internal scratch']
  %s0 = inlined_call_operand.hbm [shape: f32[16,1024], index: 0, kind: input, shape index: {}]
  %s1 = inlined_call_operand.hbm [shape: bf16[1024,256], index: 1, kind: input, shape index: {}]
  %s2 = inlined_call_operand.hbm [shape: f32[1,256], index: 2, kind: input, shape index: {}]
  %s3 = inlined_call_operand.hbm [shape: bf16[256,1024], index: 3, kind: input, shape index: {}]
  %s4 = inlined_call_operand.hbm [shape: f32[1,1024], index: 4, kind: input, shape index: {}]
  %s5 = inlined_call_operand.hbm [shape: bf16[1024,256], index: 5, kind: input, shape index: {}]
  %s6 = inlined_call_operand.vmem [shape: f32[1,256], index: 6, kind: input, shape index: {}]
  %s7 = inlined_call_operand.hbm [shape: f32[2,8,128], index: 7, kind: output, shape index: {}]
  %s8 = sld [smem:[#allocation0]]
  $region62: #{tpu_custom_call.1} parent=0
    _
  %s10 = ssub.s32 1, %s8
  %s11 = scalar_select 0, %s10, %s8
  $region1: #{tpu_custom_call.1} parent=0
    #allocation2 [shape = 'u8[65536]{0}', space=vmem, size = 0x10000, scoped, tag = 'input window, operand 0, single buffered']
    #allocation3 [shape = 's32[1]{0}', space=sflag, size = 0x4, scoped, tag = 'scoped memory for tpu_custom_call.1']
    #allocation4 [shape = 's32[1]{0}', space=sflag, size = 0x4, scoped, tag = 'scoped memory for tpu_custom_call.1']
    #allocation5 [shape = 'u8[524288]{0}', space=vmem, size = 0x80000, scoped, tag = 'input window, operand 1, single buffered']
    #allocation6 [shape = 's32[1]{0}', space=sflag, size = 0x4, scoped, tag = 'scoped memory for tpu_custom_call.1']
    #allocation7 [shape = 'u8[1024]{0}', space=vmem, size = 0x400, scoped, tag = 'input window, operand 2, single buffered']
    #allocation8 [shape = 'u8[524288]{0}', space=vmem, size = 0x80000, scoped, tag = 'input window, operand 3, single buffered']
    #allocation9 [shape = 's32[1]{0}', space=sflag, size = 0x4, scoped, tag = 'scoped memory for tpu_custom_call.1']
    #allocation10 [shape = 'u8[4096]{0}', space=vmem, size = 0x1000, scoped, tag = 'input window, operand 4, single buffered']
    #allocation11 [shape = 'u8[524288]{0}', space=vmem, size = 0x80000, scoped, tag = 'input window, operand 5, single buffered']
    #allocation12 [shape = 's32[1]{0}', space=sflag, size = 0x4, scoped, tag = 'scoped memory for tpu_custom_call.1']
    #allocation13 [shape = 'u8[8192]{0}', space=vmem, size = 0x2000, scoped, tag = 'output window, operand 0, single buffered']
    %12 = vsyncpa [#allocation3], 0
    %13 = vsyncpa [#allocation6], 0
    %14 = vsyncpa [#allocation9], 0
    %15 = vsyncpa [#allocation12], 0
    %16 = vsyncpa [#allocation4], 0
    // Predicated region
    $region2: #{tpu_custom_call.1} parent=1 // pred_check
      _
    $region3: #{tpu_custom_call.1} parent=1 // pred_check_branch
      %18 = sbr.rel (0) target = $region5
    $region4: #{tpu_custom_call.1} parent=1 // pred_region
      %20 = vsyncadd [#allocation3], 0
      %s21 = sshll.u32 %s0, 4
      %s22 = int_to_ptr.hbm [resolvable:$true] %s21
      %s23 = sshll.u32 [#allocation2], 4
      %s24 = int_to_ptr.vmem [resolvable:$true] %s23
      %29 = dma.hbm_to_vmem [thread:$0]  %s22, 2048, %s24, [#allocation3], 1024, 1024, 64
    $region5: #{tpu_custom_call.1} parent=1 // pred_fallthru
      _
    // Predicated region
    $region6: #{tpu_custom_call.1} parent=1 // pred_check
      _
    $region7: #{tpu_custom_call.1} parent=1 // pred_check_branch
      %31 = sbr.rel (0) target = $region9
    $region8: #{tpu_custom_call.1} parent=1 // pred_region
      %33 = vsyncadd [#allocation6], 0
      %s34 = sshll.u32 %s1, 4
      %s35 = int_to_ptr.hbm [resolvable:$true] %s34
      %s36 = sshll.u32 [#allocation5], 4
      %s37 = int_to_ptr.vmem [resolvable:$true] %s36
      %42 = dma.hbm_to_vmem [thread:$0]  %s35, 16384, %s37, [#allocation6], 128, 128, 8
    $region9: #{tpu_custom_call.1} parent=1 // pred_fallthru
      _
    // Predicated region
    $region10: #{tpu_custom_call.1} parent=1 // pred_check
      _
    $region11: #{tpu_custom_call.1} parent=1 // pred_check_branch
      %44 = sbr.rel (0) target = $region13
    $region12: #{tpu_custom_call.1} parent=1 // pred_region
      %46 = vsyncadd [#allocation6], 0
      %s48 = sshll.u32 %s2, 4
      %s49 = int_to_ptr.hbm [resolvable:$true] %s48
      %s50 = sshll.u32 [#allocation7], 4
      %s51 = int_to_ptr.vmem [resolvable:$true] %s50
      %53 = dma.hbm_to_vmem [thread:$0]  %s49, 32, %s51, [#allocation6]
    $region13: #{tpu_custom_call.1} parent=1 // pred_fallthru
      _
    // Predicated region
    $region14: #{tpu_custom_call.1} parent=1 // pred_check
      _
    $region15: #{tpu_custom_call.1} parent=1 // pred_check_branch
      %55 = sbr.rel (0) target = $region17
    $region16: #{tpu_custom_call.1} parent=1 // pred_region
      %57 = vsyncadd [#allocation9], 0
      %s58 = sshll.u32 %s3, 4
      %s59 = int_to_ptr.hbm [resolvable:$true] %s58
      %s60 = sshll.u32 [#allocation8], 4
      %s61 = int_to_ptr.vmem [resolvable:$true] %s60
      %66 = dma.hbm_to_vmem [thread:$0]  %s59, 16384, %s61, [#allocation9], 512, 512, 32
    $region17: #{tpu_custom_call.1} parent=1 // pred_fallthru
      _
    // Predicated region
    $region18: #{tpu_custom_call.1} parent=1 // pred_check
      _
    $region19: #{tpu_custom_call.1} parent=1 // pred_check_branch
      %68 = sbr.rel (0) target = $region21
    $region20: #{tpu_custom_call.1} parent=1 // pred_region
      %70 = vsyncadd [#allocation9], 0
      %s72 = sshll.u32 %s4, 4
      %s73 = int_to_ptr.hbm [resolvable:$true] %s72
      %s74 = sshll.u32 [#allocation10], 4
      %s75 = int_to_ptr.vmem [resolvable:$true] %s74
      %77 = dma.hbm_to_vmem [thread:$0]  %s73, 128, %s75, [#allocation9]
    $region21: #{tpu_custom_call.1} parent=1 // pred_fallthru
      _
    // Predicated region
    $region22: #{tpu_custom_call.1} parent=1 // pred_check
      _
    $region23: #{tpu_custom_call.1} parent=1 // pred_check_branch
      %79 = sbr.rel (0) target = $region25
    $region24: #{tpu_custom_call.1} parent=1 // pred_region
      %81 = vsyncadd [#allocation12], 0
      %s82 = sshll.u32 %s5, 4
      %s83 = int_to_ptr.hbm [resolvable:$true] %s82
      %s84 = sshll.u32 [#allocation11], 4
      %s85 = int_to_ptr.vmem [resolvable:$true] %s84
      %90 = dma.hbm_to_vmem [thread:$0]  %s83, 16384, %s85, [#allocation12], 128, 128, 8
    $region25: #{tpu_custom_call.1} parent=1 // pred_fallthru
      _
    // Predicated region
    $region26: #{tpu_custom_call.1} parent=1 // pred_check
      _
    $region27: #{tpu_custom_call.1} parent=1 // pred_check_branch
      %92 = sbr.rel (0) target = $region29
    $region28: #{tpu_custom_call.1} parent=1 // pred_region
      _
    $region29: #{tpu_custom_call.1} parent=1 // pred_fallthru
      _
    // Predicated region
    $region30: #{tpu_custom_call.1} parent=1 // pred_check
      _
    $region31: #{tpu_custom_call.1} parent=1 // pred_check_branch
      %94 = sbr.rel (0) target = $region33
    $region32: #{tpu_custom_call.1} parent=1 // pred_region
      %96 = dma.done [#allocation3], 2048
    $region33: #{tpu_custom_call.1} parent=1 // pred_fallthru
      _
    // Predicated region
    $region34: #{tpu_custom_call.1} parent=1 // pred_check
      _
    $region35: #{tpu_custom_call.1} parent=1 // pred_check_branch
      %98 = sbr.rel (0) target = $region37
    $region36: #{tpu_custom_call.1} parent=1 // pred_region
      %100 = dma.done [#allocation6], 16384
    $region37: #{tpu_custom_call.1} parent=1 // pred_fallthru
      _
    // Predicated region
    $region38: #{tpu_custom_call.1} parent=1 // pred_check
      _
    $region39: #{tpu_custom_call.1} parent=1 // pred_check_branch
      %102 = sbr.rel (0) target = $region41
    $region40: #{tpu_custom_call.1} parent=1 // pred_region
      %104 = dma.done [#allocation6], 32
    $region41: #{tpu_custom_call.1} parent=1 // pred_fallthru
      _
    // Predicated region
    $region42: #{tpu_custom_call.1} parent=1 // pred_check
      _
    $region43: #{tpu_custom_call.1} parent=1 // pred_check_branch
      %106 = sbr.rel (0) target = $region45
    $region44: #{tpu_custom_call.1} parent=1 // pred_region
      %108 = dma.done [#allocation9], 16384
    $region45: #{tpu_custom_call.1} parent=1 // pred_fallthru
      _
    // Predicated region
    $region46: #{tpu_custom_call.1} parent=1 // pred_check
      _
    $region47: #{tpu_custom_call.1} parent=1 // pred_check_branch
      %110 = sbr.rel (0) target = $region49
    $region48: #{tpu_custom_call.1} parent=1 // pred_region
      %112 = dma.done [#allocation9], 128
    $region49: #{tpu_custom_call.1} parent=1 // pred_fallthru
      _
    // Predicated region
    $region50: #{tpu_custom_call.1} parent=1 // pred_check
      _
    $region51: #{tpu_custom_call.1} parent=1 // pred_check_branch
      %114 = sbr.rel (0) target = $region53
    $region52: #{tpu_custom_call.1} parent=1 // pred_region
      %116 = dma.done [#allocation12], 16384
    $region53: #{tpu_custom_call.1} parent=1 // pred_fallthru
      _
    %v118 = vld [vmem:[#allocation2] sm:$0xff]
    %v119 = vld [vmem:[#allocation2 + $0x8] sm:$0xff]
    %v120 = vld [vmem:[#allocation2 + $0x10] sm:$0xff]
    %v121 = vld [vmem:[#allocation2 + $0x18] sm:$0xff]
    %v122 = vld [vmem:[#allocation2 + $0x20] sm:$0xff]
    %v123 = vld [vmem:[#allocation2 + $0x28] sm:$0xff]
    %v124 = vld [vmem:[#allocation2 + $0x30] sm:$0xff]
    %v125 = vld [vmem:[#allocation2 + $0x38] sm:$0xff]
    %v126 = vld [vmem:[#allocation2 + $0x40] sm:$0xff]
    %v127 = vld [vmem:[#allocation2 + $0x48] sm:$0xff]
    %v128 = vld [vmem:[#allocation2 + $0x50] sm:$0xff]
    %v129 = vld [vmem:[#allocation2 + $0x58] sm:$0xff]
    %v130 = vld [vmem:[#allocation2 + $0x60] sm:$0xff]
    %v131 = vld [vmem:[#allocation2 + $0x68] sm:$0xff]
    %v132 = vld [vmem:[#allocation2 + $0x70] sm:$0xff]
    %v133 = vld [vmem:[#allocation2 + $0x78] sm:$0xff]
    %v134 = vpack.c.bf16 %v126, %v118
    %v135 = vpack.c.bf16 %v127, %v119
    %v136 = vpack.c.bf16 %v128, %v120
    %v137 = vpack.c.bf16 %v129, %v121
    %v138 = vpack.c.bf16 %v130, %v122
    %v139 = vpack.c.bf16 %v131, %v123
    %v140 = vpack.c.bf16 %v132, %v124
    %v141 = vpack.c.bf16 %v133, %v125
    %v142 = vld [vmem:[#allocation5] sm:$0xff]
    %v143 = vld [vmem:[#allocation5 + $0x8] sm:$0xff]
    %v144 = vld [vmem:[#allocation5 + $0x10] sm:$0xff]
    %v145 = vld [vmem:[#allocation5 + $0x18] sm:$0xff]
    %v146 = vld [vmem:[#allocation5 + $0x20] sm:$0xff]
    %v147 = vld [vmem:[#allocation5 + $0x28] sm:$0xff]
    %v148 = vld [vmem:[#allocation5 + $0x30] sm:$0xff]
    %v149 = vld [vmem:[#allocation5 + $0x38] sm:$0xff]
    %v150 = vld [vmem:[#allocation5 + $0x40] sm:$0xff]
    %v151 = vld [vmem:[#allocation5 + $0x48] sm:$0xff]
    %v152 = vld [vmem:[#allocation5 + $0x50] sm:$0xff]
    %v153 = vld [vmem:[#allocation5 + $0x58] sm:$0xff]
    %v154 = vld [vmem:[#allocation5 + $0x60] sm:$0xff]
    %v155 = vld [vmem:[#allocation5 + $0x68] sm:$0xff]
    %v156 = vld [vmem:[#allocation5 + $0x70] sm:$0xff]
    %v157 = vld [vmem:[#allocation5 + $0x78] sm:$0xff]
    %v158 = vld [vmem:[#allocation5 + $0x80] sm:$0xff]
    %v159 = vld [vmem:[#allocation5 + $0x88] sm:$0xff]
    %v160 = vld [vmem:[#allocation5 + $0x90] sm:$0xff]
    %v161 = vld [vmem:[#allocation5 + $0x98] sm:$0xff]
    %v162 = vld [vmem:[#allocation5 + $0xa0] sm:$0xff]
    %v163 = vld [vmem:[#allocation5 + $0xa8] sm:$0xff]
    %v164 = vld [vmem:[#allocation5 + $0xb0] sm:$0xff]
    %v165 = vld [vmem:[#allocation5 + $0xb8] sm:$0xff]
    %v166 = vld [vmem:[#allocation5 + $0xc0] sm:$0xff]
    %v167 = vld [vmem:[#allocation5 + $0xc8] sm:$0xff]
    %v168 = vld [vmem:[#allocation5 + $0xd0] sm:$0xff]
    %v169 = vld [vmem:[#allocation5 + $0xd8] sm:$0xff]
    %v170 = vld [vmem:[#allocation5 + $0xe0] sm:$0xff]
    %v171 = vld [vmem:[#allocation5 + $0xe8] sm:$0xff]
    %v172 = vld [vmem:[#allocation5 + $0xf0] sm:$0xff]
    %v173 = vld [vmem:[#allocation5 + $0xf8] sm:$0xff]
    %v174 = vld [vmem:[#allocation5 + $0x100] sm:$0xff]
    %v175 = vld [vmem:[#allocation5 + $0x108] sm:$0xff]
    %v176 = vld [vmem:[#allocation5 + $0x110] sm:$0xff]
    %v177 = vld [vmem:[#allocation5 + $0x118] sm:$0xff]
    %v178 = vld [vmem:[#allocation5 + $0x120] sm:$0xff]
    %v179 = vld [vmem:[#allocation5 + $0x128] sm:$0xff]
    %v180 = vld [vmem:[#allocation5 + $0x130] sm:$0xff]
    %v181 = vld [vmem:[#allocation5 + $0x138] sm:$0xff]
    %v182 = vld [vmem:[#allocation5 + $0x140] sm:$0xff]
    %v183 = vld [vmem:[#allocation5 + $0x148] sm:$0xff]
    %v184 = vld [vmem:[#allocation5 + $0x150] sm:$0xff]
    %v185 = vld [vmem:[#allocation5 + $0x158] sm:$0xff]
    %v186 = vld [vmem:[#allocation5 + $0x160] sm:$0xff]
    %v187 = vld [vmem:[#allocation5 + $0x168] sm:$0xff]
    %v188 = vld [vmem:[#allocation5 + $0x170] sm:$0xff]
    %v189 = vld [vmem:[#allocation5 + $0x178] sm:$0xff]
    %v190 = vld [vmem:[#allocation5 + $0x180] sm:$0xff]
    %v191 = vld [vmem:[#allocation5 + $0x188] sm:$0xff]
    %v192 = vld [vmem:[#allocation5 + $0x190] sm:$0xff]
    %v193 = vld [vmem:[#allocation5 + $0x198] sm:$0xff]
    %v194 = vld [vmem:[#allocation5 + $0x1a0] sm:$0xff]
    %v195 = vld [vmem:[#allocation5 + $0x1a8] sm:$0xff]
    %v196 = vld [vmem:[#allocation5 + $0x1b0] sm:$0xff]
    %v197 = vld [vmem:[#allocation5 + $0x1b8] sm:$0xff]
    %v198 = vld [vmem:[#allocation5 + $0x1c0] sm:$0xff]
    %v199 = vld [vmem:[#allocation5 + $0x1c8] sm:$0xff]
    %v200 = vld [vmem:[#allocation5 + $0x1d0] sm:$0xff]
    %v201 = vld [vmem:[#allocation5 + $0x1d8] sm:$0xff]
    %v202 = vld [vmem:[#allocation5 + $0x1e0] sm:$0xff]
    %v203 = vld [vmem:[#allocation5 + $0x1e8] sm:$0xff]
    %v204 = vld [vmem:[#allocation5 + $0x1f0] sm:$0xff]
    %v205 = vld [vmem:[#allocation5 + $0x1f8] sm:$0xff]
    %v206 = vld [vmem:[#allocation5 + $0x200] sm:$0xff]
    %v207 = vld [vmem:[#allocation5 + $0x208] sm:$0xff]
    %v208 = vld [vmem:[#allocation5 + $0x210] sm:$0xff]
    %v209 = vld [vmem:[#allocation5 + $0x218] sm:$0xff]
    %v210 = vld [vmem:[#allocation5 + $0x220] sm:$0xff]
    %v211 = vld [vmem:[#allocation5 + $0x228] sm:$0xff]
    %v212 = vld [vmem:[#allocation5 + $0x230] sm:$0xff]
    %v213 = vld [vmem:[#allocation5 + $0x238] sm:$0xff]
    %v214 = vld [vmem:[#allocation5 + $0x240] sm:$0xff]
    %v215 = vld [vmem:[#allocation5 + $0x248] sm:$0xff]
    %v216 = vld [vmem:[#allocation5 + $0x250] sm:$0xff]
    %v217 = vld [vmem:[#allocation5 + $0x258] sm:$0xff]
    %v218 = vld [vmem:[#allocation5 + $0x260] sm:$0xff]
    %v219 = vld [vmem:[#allocation5 + $0x268] sm:$0xff]
    %v220 = vld [vmem:[#allocation5 + $0x270] sm:$0xff]
    %v221 = vld [vmem:[#allocation5 + $0x278] sm:$0xff]
    %v222 = vld [vmem:[#allocation5 + $0x280] sm:$0xff]
    %v223 = vld [vmem:[#allocation5 + $0x288] sm:$0xff]
    %v224 = vld [vmem:[#allocation5 + $0x290] sm:$0xff]
    %v225 = vld [vmem:[#allocation5 + $0x298] sm:$0xff]
    %v226 = vld [vmem:[#allocation5 + $0x2a0] sm:$0xff]
    %v227 = vld [vmem:[#allocation5 + $0x2a8] sm:$0xff]
    %v228 = vld [vmem:[#allocation5 + $0x2b0] sm:$0xff]
    %v229 = vld [vmem:[#allocation5 + $0x2b8] sm:$0xff]
    %v230 = vld [vmem:[#allocation5 + $0x2c0] sm:$0xff]
    %v231 = vld [vmem:[#allocation5 + $0x2c8] sm:$0xff]
    %v232 = vld [vmem:[#allocation5 + $0x2d0] sm:$0xff]
    %v233 = vld [vmem:[#allocation5 + $0x2d8] sm:$0xff]
    %v234 = vld [vmem:[#allocation5 + $0x2e0] sm:$0xff]
    %v235 = vld [vmem:[#allocation5 + $0x2e8] sm:$0xff]
    %v236 = vld [vmem:[#allocation5 + $0x2f0] sm:$0xff]
    %v237 = vld [vmem:[#allocation5 + $0x2f8] sm:$0xff]
    %v238 = vld [vmem:[#allocation5 + $0x300] sm:$0xff]
    %v239 = vld [vmem:[#allocation5 + $0x308] sm:$0xff]
    %v240 = vld [vmem:[#allocation5 + $0x310] sm:$0xff]
    %v241 = vld [vmem:[#allocation5 + $0x318] sm:$0xff]
    %v242 = vld [vmem:[#allocation5 + $0x320] sm:$0xff]
    %v243 = vld [vmem:[#allocation5 + $0x328] sm:$0xff]
    %v244 = vld [vmem:[#allocation5 + $0x330] sm:$0xff]
    %v245 = vld [vmem:[#allocation5 + $0x338] sm:$0xff]
    %v246 = vld [vmem:[#allocation5 + $0x340] sm:$0xff]
    %v247 = vld [vmem:[#allocation5 + $0x348] sm:$0xff]
    %v248 = vld [vmem:[#allocation5 + $0x350] sm:$0xff]
    %v249 = vld [vmem:[#allocation5 + $0x358] sm:$0xff]
    %v250 = vld [vmem:[#allocation5 + $0x360] sm:$0xff]
    %v251 = vld [vmem:[#allocation5 + $0x368] sm:$0xff]
    %v252 = vld [vmem:[#allocation5 + $0x370] sm:$0xff]
    %v253 = vld [vmem:[#allocation5 + $0x378] sm:$0xff]
    %v254 = vld [vmem:[#allocation5 + $0x380] sm:$0xff]
    %v255 = vld [vmem:[#allocation5 + $0x388] sm:$0xff]
    %v256 = vld [vmem:[#allocation5 + $0x390] sm:$0xff]
    %v257 = vld [vmem:[#allocation5 + $0x398] sm:$0xff]
    %v258 = vld [vmem:[#allocation5 + $0x3a0] sm:$0xff]
    %v259 = vld [vmem:[#allocation5 + $0x3a8] sm:$0xff]
    %v260 = vld [vmem:[#allocation5 + $0x3b0] sm:$0xff]
    %v261 = vld [vmem:[#allocation5 + $0x3b8] sm:$0xff]
    %v262 = vld [vmem:[#allocation5 + $0x3c0] sm:$0xff]
    %v263 = vld [vmem:[#allocation5 + $0x3c8] sm:$0xff]
    %v264 = vld [vmem:[#allocation5 + $0x3d0] sm:$0xff]
    %v265 = vld [vmem:[#allocation5 + $0x3d8] sm:$0xff]
    %v266 = vld [vmem:[#allocation5 + $0x3e0] sm:$0xff]
    %v267 = vld [vmem:[#allocation5 + $0x3e8] sm:$0xff]
    %v268 = vld [vmem:[#allocation5 + $0x3f0] sm:$0xff]
    %v269 = vld [vmem:[#allocation5 + $0x3f8] sm:$0xff]
    %v270 = vld [vmem:[#allocation7] sm:$0x3]
    %v272 = vperm.slane %v270, 0
    %v273 = vperm.slane %v270, 1
    %v404 = vunpack.c.l.b16 %v142
    %v405 = vunpack.c.h.b16 %v142
    %v406 = vunpack.c.l.b16 %v143
    %v407 = vunpack.c.h.b16 %v143
    %v408 = vunpack.c.l.b16 %v144
    %v409 = vunpack.c.h.b16 %v144
    %v410 = vunpack.c.l.b16 %v145
    %v411 = vunpack.c.h.b16 %v145
    %v412 = vunpack.c.l.b16 %v146
    %v413 = vunpack.c.h.b16 %v146
    %v414 = vunpack.c.l.b16 %v147
    %v415 = vunpack.c.h.b16 %v147
    %v416 = vunpack.c.l.b16 %v148
    %v417 = vunpack.c.h.b16 %v148
    %v418 = vunpack.c.l.b16 %v149
    %v419 = vunpack.c.h.b16 %v149
    %v420 = vunpack.c.l.b16 %v150
    %v421 = vunpack.c.h.b16 %v150
    %v422 = vunpack.c.l.b16 %v151
    %v423 = vunpack.c.h.b16 %v151
    %v424 = vunpack.c.l.b16 %v152
    %v425 = vunpack.c.h.b16 %v152
    %v426 = vunpack.c.l.b16 %v153
    %v427 = vunpack.c.h.b16 %v153
    %v428 = vunpack.c.l.b16 %v154
    %v429 = vunpack.c.h.b16 %v154
    %v430 = vunpack.c.l.b16 %v155
    %v431 = vunpack.c.h.b16 %v155
    %v432 = vunpack.c.l.b16 %v156
    %v433 = vunpack.c.h.b16 %v156
    %v434 = vunpack.c.l.b16 %v157
    %v435 = vunpack.c.h.b16 %v157
    %v436 = vunpack.c.l.b16 %v158
    %v437 = vunpack.c.h.b16 %v158
    %v438 = vunpack.c.l.b16 %v159
    %v439 = vunpack.c.h.b16 %v159
    %v440 = vunpack.c.l.b16 %v160
    %v441 = vunpack.c.h.b16 %v160
    %v442 = vunpack.c.l.b16 %v161
    %v443 = vunpack.c.h.b16 %v161
    %v444 = vunpack.c.l.b16 %v162
    %v445 = vunpack.c.h.b16 %v162
    %v446 = vunpack.c.l.b16 %v163
    %v447 = vunpack.c.h.b16 %v163
    %v448 = vunpack.c.l.b16 %v164
    %v449 = vunpack.c.h.b16 %v164
    %v450 = vunpack.c.l.b16 %v165
    %v451 = vunpack.c.h.b16 %v165
    %v452 = vunpack.c.l.b16 %v166
    %v453 = vunpack.c.h.b16 %v166
    %v454 = vunpack.c.l.b16 %v167
    %v455 = vunpack.c.h.b16 %v167
    %v456 = vunpack.c.l.b16 %v168
    %v457 = vunpack.c.h.b16 %v168
    %v458 = vunpack.c.l.b16 %v169
    %v459 = vunpack.c.h.b16 %v169
    %v460 = vunpack.c.l.b16 %v170
    %v461 = vunpack.c.h.b16 %v170
    %v462 = vunpack.c.l.b16 %v171
    %v463 = vunpack.c.h.b16 %v171
    %v464 = vunpack.c.l.b16 %v172
    %v465 = vunpack.c.h.b16 %v172
    %v466 = vunpack.c.l.b16 %v173
    %v467 = vunpack.c.h.b16 %v173
    %v468 = vunpack.c.l.b16 %v174
    %v469 = vunpack.c.h.b16 %v174
    %v470 = vunpack.c.l.b16 %v175
    %v471 = vunpack.c.h.b16 %v175
    %v472 = vunpack.c.l.b16 %v176
    %v473 = vunpack.c.h.b16 %v176
    %v474 = vunpack.c.l.b16 %v177
    %v475 = vunpack.c.h.b16 %v177
    %v476 = vunpack.c.l.b16 %v178
    %v477 = vunpack.c.h.b16 %v178
    %v478 = vunpack.c.l.b16 %v179
    %v479 = vunpack.c.h.b16 %v179
    %v480 = vunpack.c.l.b16 %v180
    %v481 = vunpack.c.h.b16 %v180
    %v482 = vunpack.c.l.b16 %v181
    %v483 = vunpack.c.h.b16 %v181
    %v484 = vunpack.c.l.b16 %v182
    %v485 = vunpack.c.h.b16 %v182
    %v486 = vunpack.c.l.b16 %v183
    %v487 = vunpack.c.h.b16 %v183
    %v488 = vunpack.c.l.b16 %v184
    %v489 = vunpack.c.h.b16 %v184
    %v490 = vunpack.c.l.b16 %v185
    %v491 = vunpack.c.h.b16 %v185
    %v492 = vunpack.c.l.b16 %v186
    %v493 = vunpack.c.h.b16 %v186
    %v494 = vunpack.c.l.b16 %v187
    %v495 = vunpack.c.h.b16 %v187
    %v496 = vunpack.c.l.b16 %v188
    %v497 = vunpack.c.h.b16 %v188
    %v498 = vunpack.c.l.b16 %v189
    %v499 = vunpack.c.h.b16 %v189
    %v500 = vunpack.c.l.b16 %v190
    %v501 = vunpack.c.h.b16 %v190
    %v502 = vunpack.c.l.b16 %v191
    %v503 = vunpack.c.h.b16 %v191
    %v504 = vunpack.c.l.b16 %v192
    %v505 = vunpack.c.h.b16 %v192
    %v506 = vunpack.c.l.b16 %v193
    %v507 = vunpack.c.h.b16 %v193
    %v508 = vunpack.c.l.b16 %v194
    %v509 = vunpack.c.h.b16 %v194
    %v510 = vunpack.c.l.b16 %v195
    %v511 = vunpack.c.h.b16 %v195
    %v512 = vunpack.c.l.b16 %v196
    %v513 = vunpack.c.h.b16 %v196
    %v514 = vunpack.c.l.b16 %v197
    %v515 = vunpack.c.h.b16 %v197
    %v516 = vunpack.c.l.b16 %v198
    %v517 = vunpack.c.h.b16 %v198
    %v518 = vunpack.c.l.b16 %v199
    %v519 = vunpack.c.h.b16 %v199
    %v520 = vunpack.c.l.b16 %v200
    %v521 = vunpack.c.h.b16 %v200
    %v522 = vunpack.c.l.b16 %v201
    %v523 = vunpack.c.h.b16 %v201
    %v524 = vunpack.c.l.b16 %v202
    %v525 = vunpack.c.h.b16 %v202
    %v526 = vunpack.c.l.b16 %v203
    %v527 = vunpack.c.h.b16 %v203
    %v528 = vunpack.c.l.b16 %v204
    %v529 = vunpack.c.h.b16 %v204
    %v530 = vunpack.c.l.b16 %v205
    %v531 = vunpack.c.h.b16 %v205
    %v532 = vunpack.c.l.b16 %v206
    %v533 = vunpack.c.h.b16 %v206
    %v534 = vunpack.c.l.b16 %v207
    %v535 = vunpack.c.h.b16 %v207
    %v536 = vunpack.c.l.b16 %v208
    %v537 = vunpack.c.h.b16 %v208
    %v538 = vunpack.c.l.b16 %v209
    %v539 = vunpack.c.h.b16 %v209
    %v540 = vunpack.c.l.b16 %v210
    %v541 = vunpack.c.h.b16 %v210
    %v542 = vunpack.c.l.b16 %v211
    %v543 = vunpack.c.h.b16 %v211
    %v544 = vunpack.c.l.b16 %v212
    %v545 = vunpack.c.h.b16 %v212
    %v546 = vunpack.c.l.b16 %v213
    %v547 = vunpack.c.h.b16 %v213
    %v548 = vunpack.c.l.b16 %v214
    %v549 = vunpack.c.h.b16 %v214
    %v550 = vunpack.c.l.b16 %v215
    %v551 = vunpack.c.h.b16 %v215
    %v552 = vunpack.c.l.b16 %v216
    %v553 = vunpack.c.h.b16 %v216
    %v554 = vunpack.c.l.b16 %v217
    %v555 = vunpack.c.h.b16 %v217
    %v556 = vunpack.c.l.b16 %v218
    %v557 = vunpack.c.h.b16 %v218
    %v558 = vunpack.c.l.b16 %v219
    %v559 = vunpack.c.h.b16 %v219
    %v560 = vunpack.c.l.b16 %v220
    %v561 = vunpack.c.h.b16 %v220
    %v562 = vunpack.c.l.b16 %v221
    %v563 = vunpack.c.h.b16 %v221
    %v564 = vunpack.c.l.b16 %v222
    %v565 = vunpack.c.h.b16 %v222
    %v566 = vunpack.c.l.b16 %v223
    %v567 = vunpack.c.h.b16 %v223
    %v568 = vunpack.c.l.b16 %v224
    %v569 = vunpack.c.h.b16 %v224
    %v570 = vunpack.c.l.b16 %v225
    %v571 = vunpack.c.h.b16 %v225
    %v572 = vunpack.c.l.b16 %v226
    %v573 = vunpack.c.h.b16 %v226
    %v574 = vunpack.c.l.b16 %v227
    %v575 = vunpack.c.h.b16 %v227
    %v576 = vunpack.c.l.b16 %v228
    %v577 = vunpack.c.h.b16 %v228
    %v578 = vunpack.c.l.b16 %v229
    %v579 = vunpack.c.h.b16 %v229
    %v580 = vunpack.c.l.b16 %v230
    %v581 = vunpack.c.h.b16 %v230
    %v582 = vunpack.c.l.b16 %v231
    %v583 = vunpack.c.h.b16 %v231
    %v584 = vunpack.c.l.b16 %v232
    %v585 = vunpack.c.h.b16 %v232
    %v586 = vunpack.c.l.b16 %v233
    %v587 = vunpack.c.h.b16 %v233
    %v588 = vunpack.c.l.b16 %v234
    %v589 = vunpack.c.h.b16 %v234
    %v590 = vunpack.c.l.b16 %v235
    %v591 = vunpack.c.h.b16 %v235
    %v592 = vunpack.c.l.b16 %v236
    %v593 = vunpack.c.h.b16 %v236
    %v594 = vunpack.c.l.b16 %v237
    %v595 = vunpack.c.h.b16 %v237
    %v596 = vunpack.c.l.b16 %v238
    %v597 = vunpack.c.h.b16 %v238
    %v598 = vunpack.c.l.b16 %v239
    %v599 = vunpack.c.h.b16 %v239
    %v600 = vunpack.c.l.b16 %v240
    %v601 = vunpack.c.h.b16 %v240
    %v602 = vunpack.c.l.b16 %v241
    %v603 = vunpack.c.h.b16 %v241
    %v604 = vunpack.c.l.b16 %v242
    %v605 = vunpack.c.h.b16 %v242
    %v606 = vunpack.c.l.b16 %v243
    %v607 = vunpack.c.h.b16 %v243
    %v608 = vunpack.c.l.b16 %v244
    %v609 = vunpack.c.h.b16 %v244
    %v610 = vunpack.c.l.b16 %v245
    %v611 = vunpack.c.h.b16 %v245
    %v612 = vunpack.c.l.b16 %v246
    %v613 = vunpack.c.h.b16 %v246
    %v614 = vunpack.c.l.b16 %v247
    %v615 = vunpack.c.h.b16 %v247
    %v616 = vunpack.c.l.b16 %v248
    %v617 = vunpack.c.h.b16 %v248
    %v618 = vunpack.c.l.b16 %v249
    %v619 = vunpack.c.h.b16 %v249
    %v620 = vunpack.c.l.b16 %v250
    %v621 = vunpack.c.h.b16 %v250
    %v622 = vunpack.c.l.b16 %v251
    %v623 = vunpack.c.h.b16 %v251
    %v624 = vunpack.c.l.b16 %v252
    %v625 = vunpack.c.h.b16 %v252
    %v626 = vunpack.c.l.b16 %v253
    %v627 = vunpack.c.h.b16 %v253
    %v628 = vunpack.c.l.b16 %v254
    %v629 = vunpack.c.h.b16 %v254
    %v630 = vunpack.c.l.b16 %v255
    %v631 = vunpack.c.h.b16 %v255
    %v632 = vunpack.c.l.b16 %v256
    %v633 = vunpack.c.h.b16 %v256
    %v634 = vunpack.c.l.b16 %v257
    %v635 = vunpack.c.h.b16 %v257
    %v636 = vunpack.c.l.b16 %v258
    %v637 = vunpack.c.h.b16 %v258
    %v638 = vunpack.c.l.b16 %v259
    %v639 = vunpack.c.h.b16 %v259
    %v640 = vunpack.c.l.b16 %v260
    %v641 = vunpack.c.h.b16 %v260
    %v642 = vunpack.c.l.b16 %v261
    %v643 = vunpack.c.h.b16 %v261
    %v644 = vunpack.c.l.b16 %v262
    %v645 = vunpack.c.h.b16 %v262
    %v646 = vunpack.c.l.b16 %v263
    %v647 = vunpack.c.h.b16 %v263
    %v648 = vunpack.c.l.b16 %v264
    %v649 = vunpack.c.h.b16 %v264
    %v650 = vunpack.c.l.b16 %v265
    %v651 = vunpack.c.h.b16 %v265
    %v652 = vunpack.c.l.b16 %v266
    %v653 = vunpack.c.h.b16 %v266
    %v654 = vunpack.c.l.b16 %v267
    %v655 = vunpack.c.h.b16 %v267
    %v656 = vunpack.c.l.b16 %v268
    %v657 = vunpack.c.h.b16 %v268
    %v658 = vunpack.c.l.b16 %v269
    %v659 = vunpack.c.h.b16 %v269
    %v660 = vpack.c.b16 %v406, %v404
    %v661 = vpack.c.b16 %v407, %v405
    %v662 = vpack.c.b16 %v410, %v408
    %v663 = vpack.c.b16 %v411, %v409
    %v664 = vpack.c.b16 %v414, %v412
    %v665 = vpack.c.b16 %v415, %v413
    %v666 = vpack.c.b16 %v418, %v416
    %v667 = vpack.c.b16 %v419, %v417
    %v668 = vpack.c.b16 %v422, %v420
    %v669 = vpack.c.b16 %v423, %v421
    %v670 = vpack.c.b16 %v426, %v424
    %v671 = vpack.c.b16 %v427, %v425
    %v672 = vpack.c.b16 %v430, %v428
    %v673 = vpack.c.b16 %v431, %v429
    %v674 = vpack.c.b16 %v434, %v432
    %v675 = vpack.c.b16 %v435, %v433
    %v676 = vpack.c.b16 %v438, %v436
    %v677 = vpack.c.b16 %v439, %v437
    %v678 = vpack.c.b16 %v442, %v440
    %v679 = vpack.c.b16 %v443, %v441
    %v680 = vpack.c.b16 %v446, %v444
    %v681 = vpack.c.b16 %v447, %v445
    %v682 = vpack.c.b16 %v450, %v448
    %v683 = vpack.c.b16 %v451, %v449
    %v684 = vpack.c.b16 %v454, %v452
    %v685 = vpack.c.b16 %v455, %v453
    %v686 = vpack.c.b16 %v458, %v456
    %v687 = vpack.c.b16 %v459, %v457
    %v688 = vpack.c.b16 %v462, %v460
    %v689 = vpack.c.b16 %v463, %v461
    %v690 = vpack.c.b16 %v466, %v464
    %v691 = vpack.c.b16 %v467, %v465
    %v692 = vpack.c.b16 %v470, %v468
    %v693 = vpack.c.b16 %v471, %v469
    %v694 = vpack.c.b16 %v474, %v472
    %v695 = vpack.c.b16 %v475, %v473
    %v696 = vpack.c.b16 %v478, %v476
    %v697 = vpack.c.b16 %v479, %v477
    %v698 = vpack.c.b16 %v482, %v480
    %v699 = vpack.c.b16 %v483, %v481
    %v700 = vpack.c.b16 %v486, %v484
    %v701 = vpack.c.b16 %v487, %v485
    %v702 = vpack.c.b16 %v490, %v488
    %v703 = vpack.c.b16 %v491, %v489
    %v704 = vpack.c.b16 %v494, %v492
    %v705 = vpack.c.b16 %v495, %v493
    %v706 = vpack.c.b16 %v498, %v496
    %v707 = vpack.c.b16 %v499, %v497
    %v708 = vpack.c.b16 %v502, %v500
    %v709 = vpack.c.b16 %v503, %v501
    %v710 = vpack.c.b16 %v506, %v504
    %v711 = vpack.c.b16 %v507, %v505
    %v712 = vpack.c.b16 %v510, %v508
    %v713 = vpack.c.b16 %v511, %v509
    %v714 = vpack.c.b16 %v514, %v512
    %v715 = vpack.c.b16 %v515, %v513
    %v716 = vpack.c.b16 %v518, %v516
    %v717 = vpack.c.b16 %v519, %v517
    %v718 = vpack.c.b16 %v522, %v520
    %v719 = vpack.c.b16 %v523, %v521
    %v720 = vpack.c.b16 %v526, %v524
    %v721 = vpack.c.b16 %v527, %v525
    %v722 = vpack.c.b16 %v530, %v528
    %v723 = vpack.c.b16 %v531, %v529
    %v724 = vpack.c.b16 %v534, %v532
    %v725 = vpack.c.b16 %v535, %v533
    %v726 = vpack.c.b16 %v538, %v536
    %v727 = vpack.c.b16 %v539, %v537
    %v728 = vpack.c.b16 %v542, %v540
    %v729 = vpack.c.b16 %v543, %v541
    %v730 = vpack.c.b16 %v546, %v544
    %v731 = vpack.c.b16 %v547, %v545
    %v732 = vpack.c.b16 %v550, %v548
    %v733 = vpack.c.b16 %v551, %v549
    %v734 = vpack.c.b16 %v554, %v552
    %v735 = vpack.c.b16 %v555, %v553
    %v736 = vpack.c.b16 %v558, %v556
    %v737 = vpack.c.b16 %v559, %v557
    %v738 = vpack.c.b16 %v562, %v560
    %v739 = vpack.c.b16 %v563, %v561
    %v740 = vpack.c.b16 %v566, %v564
    %v741 = vpack.c.b16 %v567, %v565
    %v742 = vpack.c.b16 %v570, %v568
    %v743 = vpack.c.b16 %v571, %v569
    %v744 = vpack.c.b16 %v574, %v572
    %v745 = vpack.c.b16 %v575, %v573
    %v746 = vpack.c.b16 %v578, %v576
    %v747 = vpack.c.b16 %v579, %v577
    %v748 = vpack.c.b16 %v582, %v580
    %v749 = vpack.c.b16 %v583, %v581
    %v750 = vpack.c.b16 %v586, %v584
    %v751 = vpack.c.b16 %v587, %v585
    %v752 = vpack.c.b16 %v590, %v588
    %v753 = vpack.c.b16 %v591, %v589
    %v754 = vpack.c.b16 %v594, %v592
    %v755 = vpack.c.b16 %v595, %v593
    %v756 = vpack.c.b16 %v598, %v596
    %v757 = vpack.c.b16 %v599, %v597
    %v758 = vpack.c.b16 %v602, %v600
    %v759 = vpack.c.b16 %v603, %v601
    %v760 = vpack.c.b16 %v606, %v604
    %v761 = vpack.c.b16 %v607, %v605
    %v762 = vpack.c.b16 %v610, %v608
    %v763 = vpack.c.b16 %v611, %v609
    %v764 = vpack.c.b16 %v614, %v612
    %v765 = vpack.c.b16 %v615, %v613
    %v766 = vpack.c.b16 %v618, %v616
    %v767 = vpack.c.b16 %v619, %v617
    %v768 = vpack.c.b16 %v622, %v620
    %v769 = vpack.c.b16 %v623, %v621
    %v770 = vpack.c.b16 %v626, %v624
    %v771 = vpack.c.b16 %v627, %v625
    %v772 = vpack.c.b16 %v630, %v628
    %v773 = vpack.c.b16 %v631, %v629
    %v774 = vpack.c.b16 %v634, %v632
    %v775 = vpack.c.b16 %v635, %v633
    %v776 = vpack.c.b16 %v638, %v636
    %v777 = vpack.c.b16 %v639, %v637
    %v778 = vpack.c.b16 %v642, %v640
    %v779 = vpack.c.b16 %v643, %v641
    %v780 = vpack.c.b16 %v646, %v644
    %v781 = vpack.c.b16 %v647, %v645
    %v782 = vpack.c.b16 %v650, %v648
    %v783 = vpack.c.b16 %v651, %v649
    %v784 = vpack.c.b16 %v654, %v652
    %v785 = vpack.c.b16 %v655, %v653
    %v786 = vpack.c.b16 %v658, %v656
    %v787 = vpack.c.b16 %v659, %v657
    %916 = vmatpush.bf16.msra.mxu0 %v674
    %917 = vmatpush.bf16.msra.mxu0 %v672
    %918 = vmatpush.bf16.msra.mxu0 %v670
    %919 = vmatpush.bf16.msra.mxu0 %v668
    %920 = vmatpush.bf16.msra.mxu0 %v666
    %921 = vmatpush.bf16.msra.mxu0 %v664
    %922 = vmatpush.bf16.msra.mxu0 %v662
    %923 = vmatpush.bf16.msra.mxu0 %v660
    %924 = vmatmul.bf16.gmra.mxu0 %v134
    %v925 = vpop.f32.mrf.mxu0
    %v926 = vadd.f32 %v272, %v925
    %v927 = vpop.f32.mrf.mxu0
    %v928 = vadd.f32 %v272, %v927
    %929 = vdwg.mxu0
    %930 = vmatpush.bf16.msra.mxu0 %v690
    %931 = vmatpush.bf16.msra.mxu0 %v688
    %932 = vmatpush.bf16.msra.mxu0 %v686
    %933 = vmatpush.bf16.msra.mxu0 %v684
    %934 = vmatpush.bf16.msra.mxu0 %v682
    %935 = vmatpush.bf16.msra.mxu0 %v680
    %936 = vmatpush.bf16.msra.mxu0 %v678
    %937 = vmatpush.bf16.msra.mxu0 %v676
    %938 = vmatmul.bf16.gmra.mxu0 %v135
    %v939 = vpop.f32.mrf.mxu0
    %v940 = vadd.f32 %v926, %v939
    %v941 = vpop.f32.mrf.mxu0
    %v942 = vadd.f32 %v928, %v941
    %943 = vdwg.mxu0
    %944 = vmatpush.bf16.msra.mxu0 %v706
    %945 = vmatpush.bf16.msra.mxu0 %v704
    %946 = vmatpush.bf16.msra.mxu0 %v702
    %947 = vmatpush.bf16.msra.mxu0 %v700
    %948 = vmatpush.bf16.msra.mxu0 %v698
    %949 = vmatpush.bf16.msra.mxu0 %v696
    %950 = vmatpush.bf16.msra.mxu0 %v694
    %951 = vmatpush.bf16.msra.mxu0 %v692
    %952 = vmatmul.bf16.gmra.mxu0 %v136
    %v953 = vpop.f32.mrf.mxu0
    %v954 = vadd.f32 %v940, %v953
    %v955 = vpop.f32.mrf.mxu0
    %v956 = vadd.f32 %v942, %v955
    %957 = vdwg.mxu0
    %958 = vmatpush.bf16.msra.mxu0 %v722
    %959 = vmatpush.bf16.msra.mxu0 %v720
    %960 = vmatpush.bf16.msra.mxu0 %v718
    %961 = vmatpush.bf16.msra.mxu0 %v716
    %962 = vmatpush.bf16.msra.mxu0 %v714
    %963 = vmatpush.bf16.msra.mxu0 %v712
    %964 = vmatpush.bf16.msra.mxu0 %v710
    %965 = vmatpush.bf16.msra.mxu0 %v708
    %966 = vmatmul.bf16.gmra.mxu0 %v137
    %v967 = vpop.f32.mrf.mxu0
    %v968 = vadd.f32 %v954, %v967
    %v969 = vpop.f32.mrf.mxu0
    %v970 = vadd.f32 %v956, %v969
    %971 = vdwg.mxu0
    %972 = vmatpush.bf16.msra.mxu0 %v738
    %973 = vmatpush.bf16.msra.mxu0 %v736
    %974 = vmatpush.bf16.msra.mxu0 %v734
    %975 = vmatpush.bf16.msra.mxu0 %v732
    %976 = vmatpush.bf16.msra.mxu0 %v730
    %977 = vmatpush.bf16.msra.mxu0 %v728
    %978 = vmatpush.bf16.msra.mxu0 %v726
    %979 = vmatpush.bf16.msra.mxu0 %v724
    %980 = vmatmul.bf16.gmra.mxu0 %v138
    %v981 = vpop.f32.mrf.mxu0
    %v982 = vadd.f32 %v968, %v981
    %v983 = vpop.f32.mrf.mxu0
    %v984 = vadd.f32 %v970, %v983
    %985 = vdwg.mxu0
    %986 = vmatpush.bf16.msra.mxu0 %v754
    %987 = vmatpush.bf16.msra.mxu0 %v752
    %988 = vmatpush.bf16.msra.mxu0 %v750
    %989 = vmatpush.bf16.msra.mxu0 %v748
    %990 = vmatpush.bf16.msra.mxu0 %v746
    %991 = vmatpush.bf16.msra.mxu0 %v744
    %992 = vmatpush.bf16.msra.mxu0 %v742
    %993 = vmatpush.bf16.msra.mxu0 %v740
    %994 = vmatmul.bf16.gmra.mxu0 %v139
    %v995 = vpop.f32.mrf.mxu0
    %v996 = vadd.f32 %v982, %v995
    %v997 = vpop.f32.mrf.mxu0
    %v998 = vadd.f32 %v984, %v997
    %999 = vdwg.mxu0
    %1000 = vmatpush.bf16.msra.mxu0 %v770
    %1001 = vmatpush.bf16.msra.mxu0 %v768
    %1002 = vmatpush.bf16.msra.mxu0 %v766
    %1003 = vmatpush.bf16.msra.mxu0 %v764
    %1004 = vmatpush.bf16.msra.mxu0 %v762
    %1005 = vmatpush.bf16.msra.mxu0 %v760
    %1006 = vmatpush.bf16.msra.mxu0 %v758
    %1007 = vmatpush.bf16.msra.mxu0 %v756
    %1008 = vmatmul.bf16.gmra.mxu0 %v140
    %v1009 = vpop.f32.mrf.mxu0
    %v1010 = vadd.f32 %v996, %v1009
    %v1011 = vpop.f32.mrf.mxu0
    %v1012 = vadd.f32 %v998, %v1011
    %1013 = vdwg.mxu0
    %1014 = vmatpush.bf16.msra.mxu0 %v786
    %1015 = vmatpush.bf16.msra.mxu0 %v784
    %1016 = vmatpush.bf16.msra.mxu0 %v782
    %1017 = vmatpush.bf16.msra.mxu0 %v780
    %1018 = vmatpush.bf16.msra.mxu0 %v778
    %1019 = vmatpush.bf16.msra.mxu0 %v776
    %1020 = vmatpush.bf16.msra.mxu0 %v774
    %1021 = vmatpush.bf16.msra.mxu0 %v772
    %1022 = vmatmul.bf16.gmra.mxu0 %v141
    %v1023 = vpop.f32.mrf.mxu0
    %v1024 = vadd.f32 %v1010, %v1023
    %v1025 = vpop.f32.mrf.mxu0
    %v1026 = vadd.f32 %v1012, %v1025
    %1027 = vdwg.mxu0
    %1028 = vmatpush.bf16.msra.mxu0 %v675
    %1029 = vmatpush.bf16.msra.mxu0 %v673
    %1030 = vmatpush.bf16.msra.mxu0 %v671
    %1031 = vmatpush.bf16.msra.mxu0 %v669
    %1032 = vmatpush.bf16.msra.mxu0 %v667
    %1033 = vmatpush.bf16.msra.mxu0 %v665
    %1034 = vmatpush.bf16.msra.mxu0 %v663
    %1035 = vmatpush.bf16.msra.mxu0 %v661
    %1036 = vmatmul.bf16.gmra.mxu0 %v134
    %v1037 = vpop.f32.mrf.mxu0
    %v1038 = vadd.f32 %v273, %v1037
    %v1039 = vpop.f32.mrf.mxu0
    %v1040 = vadd.f32 %v273, %v1039
    %1041 = vdwg.mxu0
    %1042 = vmatpush.bf16.msra.mxu0 %v691
    %1043 = vmatpush.bf16.msra.mxu0 %v689
    %1044 = vmatpush.bf16.msra.mxu0 %v687
    %1045 = vmatpush.bf16.msra.mxu0 %v685
    %1046 = vmatpush.bf16.msra.mxu0 %v683
    %1047 = vmatpush.bf16.msra.mxu0 %v681
    %1048 = vmatpush.bf16.msra.mxu0 %v679
    %1049 = vmatpush.bf16.msra.mxu0 %v677
    %1050 = vmatmul.bf16.gmra.mxu0 %v135
    %v1051 = vpop.f32.mrf.mxu0
    %v1052 = vadd.f32 %v1038, %v1051
    %v1053 = vpop.f32.mrf.mxu0
    %v1054 = vadd.f32 %v1040, %v1053
    %1055 = vdwg.mxu0
    %1056 = vmatpush.bf16.msra.mxu0 %v707
    %1057 = vmatpush.bf16.msra.mxu0 %v705
    %1058 = vmatpush.bf16.msra.mxu0 %v703
    %1059 = vmatpush.bf16.msra.mxu0 %v701
    %1060 = vmatpush.bf16.msra.mxu0 %v699
    %1061 = vmatpush.bf16.msra.mxu0 %v697
    %1062 = vmatpush.bf16.msra.mxu0 %v695
    %1063 = vmatpush.bf16.msra.mxu0 %v693
    %1064 = vmatmul.bf16.gmra.mxu0 %v136
    %v1065 = vpop.f32.mrf.mxu0
    %v1066 = vadd.f32 %v1052, %v1065
    %v1067 = vpop.f32.mrf.mxu0
    %v1068 = vadd.f32 %v1054, %v1067
    %1069 = vdwg.mxu0
    %1070 = vmatpush.bf16.msra.mxu0 %v723
    %1071 = vmatpush.bf16.msra.mxu0 %v721
    %1072 = vmatpush.bf16.msra.mxu0 %v719
    %1073 = vmatpush.bf16.msra.mxu0 %v717
    %1074 = vmatpush.bf16.msra.mxu0 %v715
    %1075 = vmatpush.bf16.msra.mxu0 %v713
    %1076 = vmatpush.bf16.msra.mxu0 %v711
    %1077 = vmatpush.bf16.msra.mxu0 %v709
    %1078 = vmatmul.bf16.gmra.mxu0 %v137
    %v1079 = vpop.f32.mrf.mxu0
    %v1080 = vadd.f32 %v1066, %v1079
    %v1081 = vpop.f32.mrf.mxu0
    %v1082 = vadd.f32 %v1068, %v1081
    %1083 = vdwg.mxu0
    %1084 = vmatpush.bf16.msra.mxu0 %v739
    %1085 = vmatpush.bf16.msra.mxu0 %v737
    %1086 = vmatpush.bf16.msra.mxu0 %v735
    %1087 = vmatpush.bf16.msra.mxu0 %v733
    %1088 = vmatpush.bf16.msra.mxu0 %v731
    %1089 = vmatpush.bf16.msra.mxu0 %v729
    %1090 = vmatpush.bf16.msra.mxu0 %v727
    %1091 = vmatpush.bf16.msra.mxu0 %v725
    %1092 = vmatmul.bf16.gmra.mxu0 %v138
    %v1093 = vpop.f32.mrf.mxu0
    %v1094 = vadd.f32 %v1080, %v1093
    %v1095 = vpop.f32.mrf.mxu0
    %v1096 = vadd.f32 %v1082, %v1095
    %1097 = vdwg.mxu0
    %1098 = vmatpush.bf16.msra.mxu0 %v755
    %1099 = vmatpush.bf16.msra.mxu0 %v753
    %1100 = vmatpush.bf16.msra.mxu0 %v751
    %1101 = vmatpush.bf16.msra.mxu0 %v749
    %1102 = vmatpush.bf16.msra.mxu0 %v747
    %1103 = vmatpush.bf16.msra.mxu0 %v745
    %1104 = vmatpush.bf16.msra.mxu0 %v743
    %1105 = vmatpush.bf16.msra.mxu0 %v741
    %1106 = vmatmul.bf16.gmra.mxu0 %v139
    %v1107 = vpop.f32.mrf.mxu0
    %v1108 = vadd.f32 %v1094, %v1107
    %v1109 = vpop.f32.mrf.mxu0
    %v1110 = vadd.f32 %v1096, %v1109
    %1111 = vdwg.mxu0
    %1112 = vmatpush.bf16.msra.mxu0 %v771
    %1113 = vmatpush.bf16.msra.mxu0 %v769
    %1114 = vmatpush.bf16.msra.mxu0 %v767
    %1115 = vmatpush.bf16.msra.mxu0 %v765
    %1116 = vmatpush.bf16.msra.mxu0 %v763
    %1117 = vmatpush.bf16.msra.mxu0 %v761
    %1118 = vmatpush.bf16.msra.mxu0 %v759
    %1119 = vmatpush.bf16.msra.mxu0 %v757
    %1120 = vmatmul.bf16.gmra.mxu0 %v140
    %v1121 = vpop.f32.mrf.mxu0
    %v1122 = vadd.f32 %v1108, %v1121
    %v1123 = vpop.f32.mrf.mxu0
    %v1124 = vadd.f32 %v1110, %v1123
    %1125 = vdwg.mxu0
    %1126 = vmatpush.bf16.msra.mxu0 %v787
    %1127 = vmatpush.bf16.msra.mxu0 %v785
    %1128 = vmatpush.bf16.msra.mxu0 %v783
    %1129 = vmatpush.bf16.msra.mxu0 %v781
    %1130 = vmatpush.bf16.msra.mxu0 %v779
    %1131 = vmatpush.bf16.msra.mxu0 %v777
    %1132 = vmatpush.bf16.msra.mxu0 %v775
    %1133 = vmatpush.bf16.msra.mxu0 %v773
    %1134 = vmatmul.bf16.gmra.mxu0 %v141
    %v1135 = vpop.f32.mrf.mxu0
    %v1136 = vadd.f32 %v1122, %v1135
    %v1137 = vpop.f32.mrf.mxu0
    %v1138 = vadd.f32 %v1124, %v1137
    %1139 = vdwg.mxu0
    %v1140 = vmax.f32 %v1024, 0.0
    %v1141 = vmax.f32 %v1136, 0.0
    %v1142 = vmax.f32 %v1026, 0.0
    %v1143 = vmax.f32 %v1138, 0.0
    %v1144 = vpack.c.bf16 %v1142, %v1140
    %v1145 = vpack.c.bf16 %v1143, %v1141
    %v1146 = vld [vmem:[#allocation8] sm:$0xff]
    %v1147 = vld [vmem:[#allocation8 + $0x8] sm:$0xff]
    %v1148 = vld [vmem:[#allocation8 + $0x10] sm:$0xff]
    %v1149 = vld [vmem:[#allocation8 + $0x18] sm:$0xff]
    %v1150 = vld [vmem:[#allocation8 + $0x20] sm:$0xff]
    %v1151 = vld [vmem:[#allocation8 + $0x28] sm:$0xff]
    %v1152 = vld [vmem:[#allocation8 + $0x30] sm:$0xff]
    %v1153 = vld [vmem:[#allocation8 + $0x38] sm:$0xff]
    %v1154 = vld [vmem:[#allocation8 + $0x40] sm:$0xff]
    %v1155 = vld [vmem:[#allocation8 + $0x48] sm:$0xff]
    %v1156 = vld [vmem:[#allocation8 + $0x50] sm:$0xff]
    %v1157 = vld [vmem:[#allocation8 + $0x58] sm:$0xff]
    %v1158 = vld [vmem:[#allocation8 + $0x60] sm:$0xff]
    %v1159 = vld [vmem:[#allocation8 + $0x68] sm:$0xff]
    %v1160 = vld [vmem:[#allocation8 + $0x70] sm:$0xff]
    %v1161 = vld [vmem:[#allocation8 + $0x78] sm:$0xff]
    %v1162 = vld [vmem:[#allocation8 + $0x80] sm:$0xff]
    %v1163 = vld [vmem:[#allocation8 + $0x88] sm:$0xff]
    %v1164 = vld [vmem:[#allocation8 + $0x90] sm:$0xff]
    %v1165 = vld [vmem:[#allocation8 + $0x98] sm:$0xff]
    %v1166 = vld [vmem:[#allocation8 + $0xa0] sm:$0xff]
    %v1167 = vld [vmem:[#allocation8 + $0xa8] sm:$0xff]
    %v1168 = vld [vmem:[#allocation8 + $0xb0] sm:$0xff]
    %v1169 = vld [vmem:[#allocation8 + $0xb8] sm:$0xff]
    %v1170 = vld [vmem:[#allocation8 + $0xc0] sm:$0xff]
    %v1171 = vld [vmem:[#allocation8 + $0xc8] sm:$0xff]
    %v1172 = vld [vmem:[#allocation8 + $0xd0] sm:$0xff]
    %v1173 = vld [vmem:[#allocation8 + $0xd8] sm:$0xff]
    %v1174 = vld [vmem:[#allocation8 + $0xe0] sm:$0xff]
    %v1175 = vld [vmem:[#allocation8 + $0xe8] sm:$0xff]
    %v1176 = vld [vmem:[#allocation8 + $0xf0] sm:$0xff]
    %v1177 = vld [vmem:[#allocation8 + $0xf8] sm:$0xff]
    %v1178 = vld [vmem:[#allocation8 + $0x100] sm:$0xff]
    %v1179 = vld [vmem:[#allocation8 + $0x108] sm:$0xff]
    %v1180 = vld [vmem:[#allocation8 + $0x110] sm:$0xff]
    %v1181 = vld [vmem:[#allocation8 + $0x118] sm:$0xff]
    %v1182 = vld [vmem:[#allocation8 + $0x120] sm:$0xff]
    %v1183 = vld [vmem:[#allocation8 + $0x128] sm:$0xff]
    %v1184 = vld [vmem:[#allocation8 + $0x130] sm:$0xff]
    %v1185 = vld [vmem:[#allocation8 + $0x138] sm:$0xff]
    %v1186 = vld [vmem:[#allocation8 + $0x140] sm:$0xff]
    %v1187 = vld [vmem:[#allocation8 + $0x148] sm:$0xff]
    %v1188 = vld [vmem:[#allocation8 + $0x150] sm:$0xff]
    %v1189 = vld [vmem:[#allocation8 + $0x158] sm:$0xff]
    %v1190 = vld [vmem:[#allocation8 + $0x160] sm:$0xff]
    %v1191 = vld [vmem:[#allocation8 + $0x168] sm:$0xff]
    %v1192 = vld [vmem:[#allocation8 + $0x170] sm:$0xff]
    %v1193 = vld [vmem:[#allocation8 + $0x178] sm:$0xff]
    %v1194 = vld [vmem:[#allocation8 + $0x180] sm:$0xff]
    %v1195 = vld [vmem:[#allocation8 + $0x188] sm:$0xff]
    %v1196 = vld [vmem:[#allocation8 + $0x190] sm:$0xff]
    %v1197 = vld [vmem:[#allocation8 + $0x198] sm:$0xff]
    %v1198 = vld [vmem:[#allocation8 + $0x1a0] sm:$0xff]
    %v1199 = vld [vmem:[#allocation8 + $0x1a8] sm:$0xff]
    %v1200 = vld [vmem:[#allocation8 + $0x1b0] sm:$0xff]
    %v1201 = vld [vmem:[#allocation8 + $0x1b8] sm:$0xff]
    %v1202 = vld [vmem:[#allocation8 + $0x1c0] sm:$0xff]
    %v1203 = vld [vmem:[#allocation8 + $0x1c8] sm:$0xff]
    %v1204 = vld [vmem:[#allocation8 + $0x1d0] sm:$0xff]
    %v1205 = vld [vmem:[#allocation8 + $0x1d8] sm:$0xff]
    %v1206 = vld [vmem:[#allocation8 + $0x1e0] sm:$0xff]
    %v1207 = vld [vmem:[#allocation8 + $0x1e8] sm:$0xff]
    %v1208 = vld [vmem:[#allocation8 + $0x1f0] sm:$0xff]
    %v1209 = vld [vmem:[#allocation8 + $0x1f8] sm:$0xff]
    %v1210 = vld [vmem:[#allocation8 + $0x200] sm:$0xff]
    %v1211 = vld [vmem:[#allocation8 + $0x208] sm:$0xff]
    %v1212 = vld [vmem:[#allocation8 + $0x210] sm:$0xff]
    %v1213 = vld [vmem:[#allocation8 + $0x218] sm:$0xff]
    %v1214 = vld [vmem:[#allocation8 + $0x220] sm:$0xff]
    %v1215 = vld [vmem:[#allocation8 + $0x228] sm:$0xff]
    %v1216 = vld [vmem:[#allocation8 + $0x230] sm:$0xff]
    %v1217 = vld [vmem:[#allocation8 + $0x238] sm:$0xff]
    %v1218 = vld [vmem:[#allocation8 + $0x240] sm:$0xff]
    %v1219 = vld [vmem:[#allocation8 + $0x248] sm:$0xff]
    %v1220 = vld [vmem:[#allocation8 + $0x250] sm:$0xff]
    %v1221 = vld [vmem:[#allocation8 + $0x258] sm:$0xff]
    %v1222 = vld [vmem:[#allocation8 + $0x260] sm:$0xff]
    %v1223 = vld [vmem:[#allocation8 + $0x268] sm:$0xff]
    %v1224 = vld [vmem:[#allocation8 + $0x270] sm:$0xff]
    %v1225 = vld [vmem:[#allocation8 + $0x278] sm:$0xff]
    %v1226 = vld [vmem:[#allocation8 + $0x280] sm:$0xff]
    %v1227 = vld [vmem:[#allocation8 + $0x288] sm:$0xff]
    %v1228 = vld [vmem:[#allocation8 + $0x290] sm:$0xff]
    %v1229 = vld [vmem:[#allocation8 + $0x298] sm:$0xff]
    %v1230 = vld [vmem:[#allocation8 + $0x2a0] sm:$0xff]
    %v1231 = vld [vmem:[#allocation8 + $0x2a8] sm:$0xff]
    %v1232 = vld [vmem:[#allocation8 + $0x2b0] sm:$0xff]
    %v1233 = vld [vmem:[#allocation8 + $0x2b8] sm:$0xff]
    %v1234 = vld [vmem:[#allocation8 + $0x2c0] sm:$0xff]
    %v1235 = vld [vmem:[#allocation8 + $0x2c8] sm:$0xff]
    %v1236 = vld [vmem:[#allocation8 + $0x2d0] sm:$0xff]
    %v1237 = vld [vmem:[#allocation8 + $0x2d8] sm:$0xff]
    %v1238 = vld [vmem:[#allocation8 + $0x2e0] sm:$0xff]
    %v1239 = vld [vmem:[#allocation8 + $0x2e8] sm:$0xff]
    %v1240 = vld [vmem:[#allocation8 + $0x2f0] sm:$0xff]
    %v1241 = vld [vmem:[#allocation8 + $0x2f8] sm:$0xff]
    %v1242 = vld [vmem:[#allocation8 + $0x300] sm:$0xff]
    %v1243 = vld [vmem:[#allocation8 + $0x308] sm:$0xff]
    %v1244 = vld [vmem:[#allocation8 + $0x310] sm:$0xff]
    %v1245 = vld [vmem:[#allocation8 + $0x318] sm:$0xff]
    %v1246 = vld [vmem:[#allocation8 + $0x320] sm:$0xff]
    %v1247 = vld [vmem:[#allocation8 + $0x328] sm:$0xff]
    %v1248 = vld [vmem:[#allocation8 + $0x330] sm:$0xff]
    %v1249 = vld [vmem:[#allocation8 + $0x338] sm:$0xff]
    %v1250 = vld [vmem:[#allocation8 + $0x340] sm:$0xff]
    %v1251 = vld [vmem:[#allocation8 + $0x348] sm:$0xff]
    %v1252 = vld [vmem:[#allocation8 + $0x350] sm:$0xff]
    %v1253 = vld [vmem:[#allocation8 + $0x358] sm:$0xff]
    %v1254 = vld [vmem:[#allocation8 + $0x360] sm:$0xff]
    %v1255 = vld [vmem:[#allocation8 + $0x368] sm:$0xff]
    %v1256 = vld [vmem:[#allocation8 + $0x370] sm:$0xff]
    %v1257 = vld [vmem:[#allocation8 + $0x378] sm:$0xff]
    %v1258 = vld [vmem:[#allocation8 + $0x380] sm:$0xff]
    %v1259 = vld [vmem:[#allocation8 + $0x388] sm:$0xff]
    %v1260 = vld [vmem:[#allocation8 + $0x390] sm:$0xff]
    %v1261 = vld [vmem:[#allocation8 + $0x398] sm:$0xff]
    %v1262 = vld [vmem:[#allocation8 + $0x3a0] sm:$0xff]
    %v1263 = vld [vmem:[#allocation8 + $0x3a8] sm:$0xff]
    %v1264 = vld [vmem:[#allocation8 + $0x3b0] sm:$0xff]
    %v1265 = vld [vmem:[#allocation8 + $0x3b8] sm:$0xff]
    %v1266 = vld [vmem:[#allocation8 + $0x3c0] sm:$0xff]
    %v1267 = vld [vmem:[#allocation8 + $0x3c8] sm:$0xff]
    %v1268 = vld [vmem:[#allocation8 + $0x3d0] sm:$0xff]
    %v1269 = vld [vmem:[#allocation8 + $0x3d8] sm:$0xff]
    %v1270 = vld [vmem:[#allocation8 + $0x3e0] sm:$0xff]
    %v1271 = vld [vmem:[#allocation8 + $0x3e8] sm:$0xff]
    %v1272 = vld [vmem:[#allocation8 + $0x3f0] sm:$0xff]
    %v1273 = vld [vmem:[#allocation8 + $0x3f8] sm:$0xff]
    %v1274 = vld [vmem:[#allocation10] sm:$0xff]
    %v1276 = vperm.slane %v1274, 0
    %v1277 = vperm.slane %v1274, 1
    %v1278 = vperm.slane %v1274, 2
    %v1279 = vperm.slane %v1274, 3
    %v1280 = vperm.slane %v1274, 4
    %v1281 = vperm.slane %v1274, 5
    %v1282 = vperm.slane %v1274, 6
    %v1283 = vperm.slane %v1274, 7
    %v1420 = vunpack.c.l.b16 %v1146
    %v1421 = vunpack.c.h.b16 %v1146
    %v1422 = vunpack.c.l.b16 %v1147
    %v1423 = vunpack.c.h.b16 %v1147
    %v1424 = vunpack.c.l.b16 %v1148
    %v1425 = vunpack.c.h.b16 %v1148
    %v1426 = vunpack.c.l.b16 %v1149
    %v1427 = vunpack.c.h.b16 %v1149
    %v1428 = vunpack.c.l.b16 %v1150
    %v1429 = vunpack.c.h.b16 %v1150
    %v1430 = vunpack.c.l.b16 %v1151
    %v1431 = vunpack.c.h.b16 %v1151
    %v1432 = vunpack.c.l.b16 %v1152
    %v1433 = vunpack.c.h.b16 %v1152
    %v1434 = vunpack.c.l.b16 %v1153
    %v1435 = vunpack.c.h.b16 %v1153
    %v1436 = vunpack.c.l.b16 %v1154
    %v1437 = vunpack.c.h.b16 %v1154
    %v1438 = vunpack.c.l.b16 %v1155
    %v1439 = vunpack.c.h.b16 %v1155
    %v1440 = vunpack.c.l.b16 %v1156
    %v1441 = vunpack.c.h.b16 %v1156
    %v1442 = vunpack.c.l.b16 %v1157
    %v1443 = vunpack.c.h.b16 %v1157
    %v1444 = vunpack.c.l.b16 %v1158
    %v1445 = vunpack.c.h.b16 %v1158
    %v1446 = vunpack.c.l.b16 %v1159
    %v1447 = vunpack.c.h.b16 %v1159
    %v1448 = vunpack.c.l.b16 %v1160
    %v1449 = vunpack.c.h.b16 %v1160
    %v1450 = vunpack.c.l.b16 %v1161
    %v1451 = vunpack.c.h.b16 %v1161
    %v1452 = vunpack.c.l.b16 %v1162
    %v1453 = vunpack.c.h.b16 %v1162
    %v1454 = vunpack.c.l.b16 %v1163
    %v1455 = vunpack.c.h.b16 %v1163
    %v1456 = vunpack.c.l.b16 %v1164
    %v1457 = vunpack.c.h.b16 %v1164
    %v1458 = vunpack.c.l.b16 %v1165
    %v1459 = vunpack.c.h.b16 %v1165
    %v1460 = vunpack.c.l.b16 %v1166
    %v1461 = vunpack.c.h.b16 %v1166
    %v1462 = vunpack.c.l.b16 %v1167
    %v1463 = vunpack.c.h.b16 %v1167
    %v1464 = vunpack.c.l.b16 %v1168
    %v1465 = vunpack.c.h.b16 %v1168
    %v1466 = vunpack.c.l.b16 %v1169
    %v1467 = vunpack.c.h.b16 %v1169
    %v1468 = vunpack.c.l.b16 %v1170
    %v1469 = vunpack.c.h.b16 %v1170
    %v1470 = vunpack.c.l.b16 %v1171
    %v1471 = vunpack.c.h.b16 %v1171
    %v1472 = vunpack.c.l.b16 %v1172
    %v1473 = vunpack.c.h.b16 %v1172
    %v1474 = vunpack.c.l.b16 %v1173
    %v1475 = vunpack.c.h.b16 %v1173
    %v1476 = vunpack.c.l.b16 %v1174
    %v1477 = vunpack.c.h.b16 %v1174
    %v1478 = vunpack.c.l.b16 %v1175
    %v1479 = vunpack.c.h.b16 %v1175
    %v1480 = vunpack.c.l.b16 %v1176
    %v1481 = vunpack.c.h.b16 %v1176
    %v1482 = vunpack.c.l.b16 %v1177
    %v1483 = vunpack.c.h.b16 %v1177
    %v1484 = vunpack.c.l.b16 %v1178
    %v1485 = vunpack.c.h.b16 %v1178
    %v1486 = vunpack.c.l.b16 %v1179
    %v1487 = vunpack.c.h.b16 %v1179
    %v1488 = vunpack.c.l.b16 %v1180
    %v1489 = vunpack.c.h.b16 %v1180
    %v1490 = vunpack.c.l.b16 %v1181
    %v1491 = vunpack.c.h.b16 %v1181
    %v1492 = vunpack.c.l.b16 %v1182
    %v1493 = vunpack.c.h.b16 %v1182
    %v1494 = vunpack.c.l.b16 %v1183
    %v1495 = vunpack.c.h.b16 %v1183
    %v1496 = vunpack.c.l.b16 %v1184
    %v1497 = vunpack.c.h.b16 %v1184
    %v1498 = vunpack.c.l.b16 %v1185
    %v1499 = vunpack.c.h.b16 %v1185
    %v1500 = vunpack.c.l.b16 %v1186
    %v1501 = vunpack.c.h.b16 %v1186
    %v1502 = vunpack.c.l.b16 %v1187
    %v1503 = vunpack.c.h.b16 %v1187
    %v1504 = vunpack.c.l.b16 %v1188
    %v1505 = vunpack.c.h.b16 %v1188
    %v1506 = vunpack.c.l.b16 %v1189
    %v1507 = vunpack.c.h.b16 %v1189
    %v1508 = vunpack.c.l.b16 %v1190
    %v1509 = vunpack.c.h.b16 %v1190
    %v1510 = vunpack.c.l.b16 %v1191
    %v1511 = vunpack.c.h.b16 %v1191
    %v1512 = vunpack.c.l.b16 %v1192
    %v1513 = vunpack.c.h.b16 %v1192
    %v1514 = vunpack.c.l.b16 %v1193
    %v1515 = vunpack.c.h.b16 %v1193
    %v1516 = vunpack.c.l.b16 %v1194
    %v1517 = vunpack.c.h.b16 %v1194
    %v1518 = vunpack.c.l.b16 %v1195
    %v1519 = vunpack.c.h.b16 %v1195
    %v1520 = vunpack.c.l.b16 %v1196
    %v1521 = vunpack.c.h.b16 %v1196
    %v1522 = vunpack.c.l.b16 %v1197
    %v1523 = vunpack.c.h.b16 %v1197
    %v1524 = vunpack.c.l.b16 %v1198
    %v1525 = vunpack.c.h.b16 %v1198
    %v1526 = vunpack.c.l.b16 %v1199
    %v1527 = vunpack.c.h.b16 %v1199
    %v1528 = vunpack.c.l.b16 %v1200
    %v1529 = vunpack.c.h.b16 %v1200
    %v1530 = vunpack.c.l.b16 %v1201
    %v1531 = vunpack.c.h.b16 %v1201
    %v1532 = vunpack.c.l.b16 %v1202
    %v1533 = vunpack.c.h.b16 %v1202
    %v1534 = vunpack.c.l.b16 %v1203
    %v1535 = vunpack.c.h.b16 %v1203
    %v1536 = vunpack.c.l.b16 %v1204
    %v1537 = vunpack.c.h.b16 %v1204
    %v1538 = vunpack.c.l.b16 %v1205
    %v1539 = vunpack.c.h.b16 %v1205
    %v1540 = vunpack.c.l.b16 %v1206
    %v1541 = vunpack.c.h.b16 %v1206
    %v1542 = vunpack.c.l.b16 %v1207
    %v1543 = vunpack.c.h.b16 %v1207
    %v1544 = vunpack.c.l.b16 %v1208
    %v1545 = vunpack.c.h.b16 %v1208
    %v1546 = vunpack.c.l.b16 %v1209
    %v1547 = vunpack.c.h.b16 %v1209
    %v1548 = vunpack.c.l.b16 %v1210
    %v1549 = vunpack.c.h.b16 %v1210
    %v1550 = vunpack.c.l.b16 %v1211
    %v1551 = vunpack.c.h.b16 %v1211
    %v1552 = vunpack.c.l.b16 %v1212
    %v1553 = vunpack.c.h.b16 %v1212
    %v1554 = vunpack.c.l.b16 %v1213
    %v1555 = vunpack.c.h.b16 %v1213
    %v1556 = vunpack.c.l.b16 %v1214
    %v1557 = vunpack.c.h.b16 %v1214
    %v1558 = vunpack.c.l.b16 %v1215
    %v1559 = vunpack.c.h.b16 %v1215
    %v1560 = vunpack.c.l.b16 %v1216
    %v1561 = vunpack.c.h.b16 %v1216
    %v1562 = vunpack.c.l.b16 %v1217
    %v1563 = vunpack.c.h.b16 %v1217
    %v1564 = vunpack.c.l.b16 %v1218
    %v1565 = vunpack.c.h.b16 %v1218
    %v1566 = vunpack.c.l.b16 %v1219
    %v1567 = vunpack.c.h.b16 %v1219
    %v1568 = vunpack.c.l.b16 %v1220
    %v1569 = vunpack.c.h.b16 %v1220
    %v1570 = vunpack.c.l.b16 %v1221
    %v1571 = vunpack.c.h.b16 %v1221
    %v1572 = vunpack.c.l.b16 %v1222
    %v1573 = vunpack.c.h.b16 %v1222
    %v1574 = vunpack.c.l.b16 %v1223
    %v1575 = vunpack.c.h.b16 %v1223
    %v1576 = vunpack.c.l.b16 %v1224
    %v1577 = vunpack.c.h.b16 %v1224
    %v1578 = vunpack.c.l.b16 %v1225
    %v1579 = vunpack.c.h.b16 %v1225
    %v1580 = vunpack.c.l.b16 %v1226
    %v1581 = vunpack.c.h.b16 %v1226
    %v1582 = vunpack.c.l.b16 %v1227
    %v1583 = vunpack.c.h.b16 %v1227
    %v1584 = vunpack.c.l.b16 %v1228
    %v1585 = vunpack.c.h.b16 %v1228
    %v1586 = vunpack.c.l.b16 %v1229
    %v1587 = vunpack.c.h.b16 %v1229
    %v1588 = vunpack.c.l.b16 %v1230
    %v1589 = vunpack.c.h.b16 %v1230
    %v1590 = vunpack.c.l.b16 %v1231
    %v1591 = vunpack.c.h.b16 %v1231
    %v1592 = vunpack.c.l.b16 %v1232
    %v1593 = vunpack.c.h.b16 %v1232
    %v1594 = vunpack.c.l.b16 %v1233
    %v1595 = vunpack.c.h.b16 %v1233
    %v1596 = vunpack.c.l.b16 %v1234
    %v1597 = vunpack.c.h.b16 %v1234
    %v1598 = vunpack.c.l.b16 %v1235
    %v1599 = vunpack.c.h.b16 %v1235
    %v1600 = vunpack.c.l.b16 %v1236
    %v1601 = vunpack.c.h.b16 %v1236
    %v1602 = vunpack.c.l.b16 %v1237
    %v1603 = vunpack.c.h.b16 %v1237
    %v1604 = vunpack.c.l.b16 %v1238
    %v1605 = vunpack.c.h.b16 %v1238
    %v1606 = vunpack.c.l.b16 %v1239
    %v1607 = vunpack.c.h.b16 %v1239
    %v1608 = vunpack.c.l.b16 %v1240
    %v1609 = vunpack.c.h.b16 %v1240
    %v1610 = vunpack.c.l.b16 %v1241
    %v1611 = vunpack.c.h.b16 %v1241
    %v1612 = vunpack.c.l.b16 %v1242
    %v1613 = vunpack.c.h.b16 %v1242
    %v1614 = vunpack.c.l.b16 %v1243
    %v1615 = vunpack.c.h.b16 %v1243
    %v1616 = vunpack.c.l.b16 %v1244
    %v1617 = vunpack.c.h.b16 %v1244
    %v1618 = vunpack.c.l.b16 %v1245
    %v1619 = vunpack.c.h.b16 %v1245
    %v1620 = vunpack.c.l.b16 %v1246
    %v1621 = vunpack.c.h.b16 %v1246
    %v1622 = vunpack.c.l.b16 %v1247
    %v1623 = vunpack.c.h.b16 %v1247
    %v1624 = vunpack.c.l.b16 %v1248
    %v1625 = vunpack.c.h.b16 %v1248
    %v1626 = vunpack.c.l.b16 %v1249
    %v1627 = vunpack.c.h.b16 %v1249
    %v1628 = vunpack.c.l.b16 %v1250
    %v1629 = vunpack.c.h.b16 %v1250
    %v1630 = vunpack.c.l.b16 %v1251
    %v1631 = vunpack.c.h.b16 %v1251
    %v1632 = vunpack.c.l.b16 %v1252
    %v1633 = vunpack.c.h.b16 %v1252
    %v1634 = vunpack.c.l.b16 %v1253
    %v1635 = vunpack.c.h.b16 %v1253
    %v1636 = vunpack.c.l.b16 %v1254
    %v1637 = vunpack.c.h.b16 %v1254
    %v1638 = vunpack.c.l.b16 %v1255
    %v1639 = vunpack.c.h.b16 %v1255
    %v1640 = vunpack.c.l.b16 %v1256
    %v1641 = vunpack.c.h.b16 %v1256
    %v1642 = vunpack.c.l.b16 %v1257
    %v1643 = vunpack.c.h.b16 %v1257
    %v1644 = vunpack.c.l.b16 %v1258
    %v1645 = vunpack.c.h.b16 %v1258
    %v1646 = vunpack.c.l.b16 %v1259
    %v1647 = vunpack.c.h.b16 %v1259
    %v1648 = vunpack.c.l.b16 %v1260
    %v1649 = vunpack.c.h.b16 %v1260
    %v1650 = vunpack.c.l.b16 %v1261
    %v1651 = vunpack.c.h.b16 %v1261
    %v1652 = vunpack.c.l.b16 %v1262
    %v1653 = vunpack.c.h.b16 %v1262
    %v1654 = vunpack.c.l.b16 %v1263
    %v1655 = vunpack.c.h.b16 %v1263
    %v1656 = vunpack.c.l.b16 %v1264
    %v1657 = vunpack.c.h.b16 %v1264
    %v1658 = vunpack.c.l.b16 %v1265
    %v1659 = vunpack.c.h.b16 %v1265
    %v1660 = vunpack.c.l.b16 %v1266
    %v1661 = vunpack.c.h.b16 %v1266
    %v1662 = vunpack.c.l.b16 %v1267
    %v1663 = vunpack.c.h.b16 %v1267
    %v1664 = vunpack.c.l.b16 %v1268
    %v1665 = vunpack.c.h.b16 %v1268
    %v1666 = vunpack.c.l.b16 %v1269
    %v1667 = vunpack.c.h.b16 %v1269
    %v1668 = vunpack.c.l.b16 %v1270
    %v1669 = vunpack.c.h.b16 %v1270
    %v1670 = vunpack.c.l.b16 %v1271
    %v1671 = vunpack.c.h.b16 %v1271
    %v1672 = vunpack.c.l.b16 %v1272
    %v1673 = vunpack.c.h.b16 %v1272
    %v1674 = vunpack.c.l.b16 %v1273
    %v1675 = vunpack.c.h.b16 %v1273
    %v1676 = vpack.c.b16 %v1428, %v1420
    %v1677 = vpack.c.b16 %v1429, %v1421
    %v1678 = vpack.c.b16 %v1430, %v1422
    %v1679 = vpack.c.b16 %v1431, %v1423
    %v1680 = vpack.c.b16 %v1432, %v1424
    %v1681 = vpack.c.b16 %v1433, %v1425
    %v1682 = vpack.c.b16 %v1434, %v1426
    %v1683 = vpack.c.b16 %v1435, %v1427
    %v1684 = vpack.c.b16 %v1444, %v1436
    %v1685 = vpack.c.b16 %v1445, %v1437
    %v1686 = vpack.c.b16 %v1446, %v1438
    %v1687 = vpack.c.b16 %v1447, %v1439
    %v1688 = vpack.c.b16 %v1448, %v1440
    %v1689 = vpack.c.b16 %v1449, %v1441
    %v1690 = vpack.c.b16 %v1450, %v1442
    %v1691 = vpack.c.b16 %v1451, %v1443
    %v1692 = vpack.c.b16 %v1460, %v1452
    %v1693 = vpack.c.b16 %v1461, %v1453
    %v1694 = vpack.c.b16 %v1462, %v1454
    %v1695 = vpack.c.b16 %v1463, %v1455
    %v1696 = vpack.c.b16 %v1464, %v1456
    %v1697 = vpack.c.b16 %v1465, %v1457
    %v1698 = vpack.c.b16 %v1466, %v1458
    %v1699 = vpack.c.b16 %v1467, %v1459
    %v1700 = vpack.c.b16 %v1476, %v1468
    %v1701 = vpack.c.b16 %v1477, %v1469
    %v1702 = vpack.c.b16 %v1478, %v1470
    %v1703 = vpack.c.b16 %v1479, %v1471
    %v1704 = vpack.c.b16 %v1480, %v1472
    %v1705 = vpack.c.b16 %v1481, %v1473
    %v1706 = vpack.c.b16 %v1482, %v1474
    %v1707 = vpack.c.b16 %v1483, %v1475
    %v1708 = vpack.c.b16 %v1492, %v1484
    %v1709 = vpack.c.b16 %v1493, %v1485
    %v1710 = vpack.c.b16 %v1494, %v1486
    %v1711 = vpack.c.b16 %v1495, %v1487
    %v1712 = vpack.c.b16 %v1496, %v1488
    %v1713 = vpack.c.b16 %v1497, %v1489
    %v1714 = vpack.c.b16 %v1498, %v1490
    %v1715 = vpack.c.b16 %v1499, %v1491
    %v1716 = vpack.c.b16 %v1508, %v1500
    %v1717 = vpack.c.b16 %v1509, %v1501
    %v1718 = vpack.c.b16 %v1510, %v1502
    %v1719 = vpack.c.b16 %v1511, %v1503
    %v1720 = vpack.c.b16 %v1512, %v1504
    %v1721 = vpack.c.b16 %v1513, %v1505
    %v1722 = vpack.c.b16 %v1514, %v1506
    %v1723 = vpack.c.b16 %v1515, %v1507
    %v1724 = vpack.c.b16 %v1524, %v1516
    %v1725 = vpack.c.b16 %v1525, %v1517
    %v1726 = vpack.c.b16 %v1526, %v1518
    %v1727 = vpack.c.b16 %v1527, %v1519
    %v1728 = vpack.c.b16 %v1528, %v1520
    %v1729 = vpack.c.b16 %v1529, %v1521
    %v1730 = vpack.c.b16 %v1530, %v1522
    %v1731 = vpack.c.b16 %v1531, %v1523
    %v1732 = vpack.c.b16 %v1540, %v1532
    %v1733 = vpack.c.b16 %v1541, %v1533
    %v1734 = vpack.c.b16 %v1542, %v1534
    %v1735 = vpack.c.b16 %v1543, %v1535
    %v1736 = vpack.c.b16 %v1544, %v1536
    %v1737 = vpack.c.b16 %v1545, %v1537
    %v1738 = vpack.c.b16 %v1546, %v1538
    %v1739 = vpack.c.b16 %v1547, %v1539
    %v1740 = vpack.c.b16 %v1556, %v1548
    %v1741 = vpack.c.b16 %v1557, %v1549
    %v1742 = vpack.c.b16 %v1558, %v1550
    %v1743 = vpack.c.b16 %v1559, %v1551
    %v1744 = vpack.c.b16 %v1560, %v1552
    %v1745 = vpack.c.b16 %v1561, %v1553
    %v1746 = vpack.c.b16 %v1562, %v1554
    %v1747 = vpack.c.b16 %v1563, %v1555
    %v1748 = vpack.c.b16 %v1572, %v1564
    %v1749 = vpack.c.b16 %v1573, %v1565
    %v1750 = vpack.c.b16 %v1574, %v1566
    %v1751 = vpack.c.b16 %v1575, %v1567
    %v1752 = vpack.c.b16 %v1576, %v1568
    %v1753 = vpack.c.b16 %v1577, %v1569
    %v1754 = vpack.c.b16 %v1578, %v1570
    %v1755 = vpack.c.b16 %v1579, %v1571
    %v1756 = vpack.c.b16 %v1588, %v1580
    %v1757 = vpack.c.b16 %v1589, %v1581
    %v1758 = vpack.c.b16 %v1590, %v1582
    %v1759 = vpack.c.b16 %v1591, %v1583
    %v1760 = vpack.c.b16 %v1592, %v1584
    %v1761 = vpack.c.b16 %v1593, %v1585
    %v1762 = vpack.c.b16 %v1594, %v1586
    %v1763 = vpack.c.b16 %v1595, %v1587
    %v1764 = vpack.c.b16 %v1604, %v1596
    %v1765 = vpack.c.b16 %v1605, %v1597
    %v1766 = vpack.c.b16 %v1606, %v1598
    %v1767 = vpack.c.b16 %v1607, %v1599
    %v1768 = vpack.c.b16 %v1608, %v1600
    %v1769 = vpack.c.b16 %v1609, %v1601
    %v1770 = vpack.c.b16 %v1610, %v1602
    %v1771 = vpack.c.b16 %v1611, %v1603
    %v1772 = vpack.c.b16 %v1620, %v1612
    %v1773 = vpack.c.b16 %v1621, %v1613
    %v1774 = vpack.c.b16 %v1622, %v1614
    %v1775 = vpack.c.b16 %v1623, %v1615
    %v1776 = vpack.c.b16 %v1624, %v1616
    %v1777 = vpack.c.b16 %v1625, %v1617
    %v1778 = vpack.c.b16 %v1626, %v1618
    %v1779 = vpack.c.b16 %v1627, %v1619
    %v1780 = vpack.c.b16 %v1636, %v1628
    %v1781 = vpack.c.b16 %v1637, %v1629
    %v1782 = vpack.c.b16 %v1638, %v1630
    %v1783 = vpack.c.b16 %v1639, %v1631
    %v1784 = vpack.c.b16 %v1640, %v1632
    %v1785 = vpack.c.b16 %v1641, %v1633
    %v1786 = vpack.c.b16 %v1642, %v1634
    %v1787 = vpack.c.b16 %v1643, %v1635
    %v1788 = vpack.c.b16 %v1652, %v1644
    %v1789 = vpack.c.b16 %v1653, %v1645
    %v1790 = vpack.c.b16 %v1654, %v1646
    %v1791 = vpack.c.b16 %v1655, %v1647
    %v1792 = vpack.c.b16 %v1656, %v1648
    %v1793 = vpack.c.b16 %v1657, %v1649
    %v1794 = vpack.c.b16 %v1658, %v1650
    %v1795 = vpack.c.b16 %v1659, %v1651
    %v1796 = vpack.c.b16 %v1668, %v1660
    %v1797 = vpack.c.b16 %v1669, %v1661
    %v1798 = vpack.c.b16 %v1670, %v1662
    %v1799 = vpack.c.b16 %v1671, %v1663
    %v1800 = vpack.c.b16 %v1672, %v1664
    %v1801 = vpack.c.b16 %v1673, %v1665
    %v1802 = vpack.c.b16 %v1674, %v1666
    %v1803 = vpack.c.b16 %v1675, %v1667
    %1932 = vmatpush.bf16.msra.mxu0 %v1732
    %1933 = vmatpush.bf16.msra.mxu0 %v1724
    %1934 = vmatpush.bf16.msra.mxu0 %v1716
    %1935 = vmatpush.bf16.msra.mxu0 %v1708
    %1936 = vmatpush.bf16.msra.mxu0 %v1700
    %1937 = vmatpush.bf16.msra.mxu0 %v1692
    %1938 = vmatpush.bf16.msra.mxu0 %v1684
    %1939 = vmatpush.bf16.msra.mxu0 %v1676
    %1940 = vmatmul.bf16.gmra.mxu0 %v1144
    %v1941 = vpop.f32.mrf.mxu0
    %v1942 = vadd.f32 %v1276, %v1941
    %v1943 = vpop.f32.mrf.mxu0
    %v1944 = vadd.f32 %v1276, %v1943
    %1945 = vdwg.mxu0
    %1946 = vmatpush.bf16.msra.mxu0 %v1796
    %1947 = vmatpush.bf16.msra.mxu0 %v1788
    %1948 = vmatpush.bf16.msra.mxu0 %v1780
    %1949 = vmatpush.bf16.msra.mxu0 %v1772
    %1950 = vmatpush.bf16.msra.mxu0 %v1764
    %1951 = vmatpush.bf16.msra.mxu0 %v1756
    %1952 = vmatpush.bf16.msra.mxu0 %v1748
    %1953 = vmatpush.bf16.msra.mxu0 %v1740
    %1954 = vmatmul.bf16.gmra.mxu0 %v1145
    %v1955 = vpop.f32.mrf.mxu0
    %v1956 = vadd.f32 %v1942, %v1955
    %v1957 = vpop.f32.mrf.mxu0
    %v1958 = vadd.f32 %v1944, %v1957
    %1959 = vdwg.mxu0
    %1960 = vmatpush.bf16.msra.mxu0 %v1733
    %1961 = vmatpush.bf16.msra.mxu0 %v1725
    %1962 = vmatpush.bf16.msra.mxu0 %v1717
    %1963 = vmatpush.bf16.msra.mxu0 %v1709
    %1964 = vmatpush.bf16.msra.mxu0 %v1701
    %1965 = vmatpush.bf16.msra.mxu0 %v1693
    %1966 = vmatpush.bf16.msra.mxu0 %v1685
    %1967 = vmatpush.bf16.msra.mxu0 %v1677
    %1968 = vmatmul.bf16.gmra.mxu0 %v1144
    %v1969 = vpop.f32.mrf.mxu0
    %v1970 = vadd.f32 %v1277, %v1969
    %v1971 = vpop.f32.mrf.mxu0
    %v1972 = vadd.f32 %v1277, %v1971
    %1973 = vdwg.mxu0
    %1974 = vmatpush.bf16.msra.mxu0 %v1797
    %1975 = vmatpush.bf16.msra.mxu0 %v1789
    %1976 = vmatpush.bf16.msra.mxu0 %v1781
    %1977 = vmatpush.bf16.msra.mxu0 %v1773
    %1978 = vmatpush.bf16.msra.mxu0 %v1765
    %1979 = vmatpush.bf16.msra.mxu0 %v1757
    %1980 = vmatpush.bf16.msra.mxu0 %v1749
    %1981 = vmatpush.bf16.msra.mxu0 %v1741
    %1982 = vmatmul.bf16.gmra.mxu0 %v1145
    %v1983 = vpop.f32.mrf.mxu0
    %v1984 = vadd.f32 %v1970, %v1983
    %v1985 = vpop.f32.mrf.mxu0
    %v1986 = vadd.f32 %v1972, %v1985
    %1987 = vdwg.mxu0
    %1988 = vmatpush.bf16.msra.mxu0 %v1734
    %1989 = vmatpush.bf16.msra.mxu0 %v1726
    %1990 = vmatpush.bf16.msra.mxu0 %v1718
    %1991 = vmatpush.bf16.msra.mxu0 %v1710
    %1992 = vmatpush.bf16.msra.mxu0 %v1702
    %1993 = vmatpush.bf16.msra.mxu0 %v1694
    %1994 = vmatpush.bf16.msra.mxu0 %v1686
    %1995 = vmatpush.bf16.msra.mxu0 %v1678
    %1996 = vmatmul.bf16.gmra.mxu0 %v1144
    %v1997 = vpop.f32.mrf.mxu0
    %v1998 = vadd.f32 %v1278, %v1997
    %v1999 = vpop.f32.mrf.mxu0
    %v2000 = vadd.f32 %v1278, %v1999
    %2001 = vdwg.mxu0
    %2002 = vmatpush.bf16.msra.mxu0 %v1798
    %2003 = vmatpush.bf16.msra.mxu0 %v1790
    %2004 = vmatpush.bf16.msra.mxu0 %v1782
    %2005 = vmatpush.bf16.msra.mxu0 %v1774
    %2006 = vmatpush.bf16.msra.mxu0 %v1766
    %2007 = vmatpush.bf16.msra.mxu0 %v1758
    %2008 = vmatpush.bf16.msra.mxu0 %v1750
    %2009 = vmatpush.bf16.msra.mxu0 %v1742
    %2010 = vmatmul.bf16.gmra.mxu0 %v1145
    %v2011 = vpop.f32.mrf.mxu0
    %v2012 = vadd.f32 %v1998, %v2011
    %v2013 = vpop.f32.mrf.mxu0
    %v2014 = vadd.f32 %v2000, %v2013
    %2015 = vdwg.mxu0
    %2016 = vmatpush.bf16.msra.mxu0 %v1735
    %2017 = vmatpush.bf16.msra.mxu0 %v1727
    %2018 = vmatpush.bf16.msra.mxu0 %v1719
    %2019 = vmatpush.bf16.msra.mxu0 %v1711
    %2020 = vmatpush.bf16.msra.mxu0 %v1703
    %2021 = vmatpush.bf16.msra.mxu0 %v1695
    %2022 = vmatpush.bf16.msra.mxu0 %v1687
    %2023 = vmatpush.bf16.msra.mxu0 %v1679
    %2024 = vmatmul.bf16.gmra.mxu0 %v1144
    %v2025 = vpop.f32.mrf.mxu0
    %v2026 = vadd.f32 %v1279, %v2025
    %v2027 = vpop.f32.mrf.mxu0
    %v2028 = vadd.f32 %v1279, %v2027
    %2029 = vdwg.mxu0
    %2030 = vmatpush.bf16.msra.mxu0 %v1799
    %2031 = vmatpush.bf16.msra.mxu0 %v1791
    %2032 = vmatpush.bf16.msra.mxu0 %v1783
    %2033 = vmatpush.bf16.msra.mxu0 %v1775
    %2034 = vmatpush.bf16.msra.mxu0 %v1767
    %2035 = vmatpush.bf16.msra.mxu0 %v1759
    %2036 = vmatpush.bf16.msra.mxu0 %v1751
    %2037 = vmatpush.bf16.msra.mxu0 %v1743
    %2038 = vmatmul.bf16.gmra.mxu0 %v1145
    %v2039 = vpop.f32.mrf.mxu0
    %v2040 = vadd.f32 %v2026, %v2039
    %v2041 = vpop.f32.mrf.mxu0
    %v2042 = vadd.f32 %v2028, %v2041
    %2043 = vdwg.mxu0
    %2044 = vmatpush.bf16.msra.mxu0 %v1736
    %2045 = vmatpush.bf16.msra.mxu0 %v1728
    %2046 = vmatpush.bf16.msra.mxu0 %v1720
    %2047 = vmatpush.bf16.msra.mxu0 %v1712
    %2048 = vmatpush.bf16.msra.mxu0 %v1704
    %2049 = vmatpush.bf16.msra.mxu0 %v1696
    %2050 = vmatpush.bf16.msra.mxu0 %v1688
    %2051 = vmatpush.bf16.msra.mxu0 %v1680
    %2052 = vmatmul.bf16.gmra.mxu0 %v1144
    %v2053 = vpop.f32.mrf.mxu0
    %v2054 = vadd.f32 %v1280, %v2053
    %v2055 = vpop.f32.mrf.mxu0
    %v2056 = vadd.f32 %v1280, %v2055
    %2057 = vdwg.mxu0
    %2058 = vmatpush.bf16.msra.mxu0 %v1800
    %2059 = vmatpush.bf16.msra.mxu0 %v1792
    %2060 = vmatpush.bf16.msra.mxu0 %v1784
    %2061 = vmatpush.bf16.msra.mxu0 %v1776
    %2062 = vmatpush.bf16.msra.mxu0 %v1768
    %2063 = vmatpush.bf16.msra.mxu0 %v1760
    %2064 = vmatpush.bf16.msra.mxu0 %v1752
    %2065 = vmatpush.bf16.msra.mxu0 %v1744
    %2066 = vmatmul.bf16.gmra.mxu0 %v1145
    %v2067 = vpop.f32.mrf.mxu0
    %v2068 = vadd.f32 %v2054, %v2067
    %v2069 = vpop.f32.mrf.mxu0
    %v2070 = vadd.f32 %v2056, %v2069
    %2071 = vdwg.mxu0
    %2072 = vmatpush.bf16.msra.mxu0 %v1737
    %2073 = vmatpush.bf16.msra.mxu0 %v1729
    %2074 = vmatpush.bf16.msra.mxu0 %v1721
    %2075 = vmatpush.bf16.msra.mxu0 %v1713
    %2076 = vmatpush.bf16.msra.mxu0 %v1705
    %2077 = vmatpush.bf16.msra.mxu0 %v1697
    %2078 = vmatpush.bf16.msra.mxu0 %v1689
    %2079 = vmatpush.bf16.msra.mxu0 %v1681
    %2080 = vmatmul.bf16.gmra.mxu0 %v1144
    %v2081 = vpop.f32.mrf.mxu0
    %v2082 = vadd.f32 %v1281, %v2081
    %v2083 = vpop.f32.mrf.mxu0
    %v2084 = vadd.f32 %v1281, %v2083
    %2085 = vdwg.mxu0
    %2086 = vmatpush.bf16.msra.mxu0 %v1801
    %2087 = vmatpush.bf16.msra.mxu0 %v1793
    %2088 = vmatpush.bf16.msra.mxu0 %v1785
    %2089 = vmatpush.bf16.msra.mxu0 %v1777
    %2090 = vmatpush.bf16.msra.mxu0 %v1769
    %2091 = vmatpush.bf16.msra.mxu0 %v1761
    %2092 = vmatpush.bf16.msra.mxu0 %v1753
    %2093 = vmatpush.bf16.msra.mxu0 %v1745
    %2094 = vmatmul.bf16.gmra.mxu0 %v1145
    %v2095 = vpop.f32.mrf.mxu0
    %v2096 = vadd.f32 %v2082, %v2095
    %v2097 = vpop.f32.mrf.mxu0
    %v2098 = vadd.f32 %v2084, %v2097
    %2099 = vdwg.mxu0
    %2100 = vmatpush.bf16.msra.mxu0 %v1738
    %2101 = vmatpush.bf16.msra.mxu0 %v1730
    %2102 = vmatpush.bf16.msra.mxu0 %v1722
    %2103 = vmatpush.bf16.msra.mxu0 %v1714
    %2104 = vmatpush.bf16.msra.mxu0 %v1706
    %2105 = vmatpush.bf16.msra.mxu0 %v1698
    %2106 = vmatpush.bf16.msra.mxu0 %v1690
    %2107 = vmatpush.bf16.msra.mxu0 %v1682
    %2108 = vmatmul.bf16.gmra.mxu0 %v1144
    %v2109 = vpop.f32.mrf.mxu0
    %v2110 = vadd.f32 %v1282, %v2109
    %v2111 = vpop.f32.mrf.mxu0
    %v2112 = vadd.f32 %v1282, %v2111
    %2113 = vdwg.mxu0
    %2114 = vmatpush.bf16.msra.mxu0 %v1802
    %2115 = vmatpush.bf16.msra.mxu0 %v1794
    %2116 = vmatpush.bf16.msra.mxu0 %v1786
    %2117 = vmatpush.bf16.msra.mxu0 %v1778
    %2118 = vmatpush.bf16.msra.mxu0 %v1770
    %2119 = vmatpush.bf16.msra.mxu0 %v1762
    %2120 = vmatpush.bf16.msra.mxu0 %v1754
    %2121 = vmatpush.bf16.msra.mxu0 %v1746
    %2122 = vmatmul.bf16.gmra.mxu0 %v1145
    %v2123 = vpop.f32.mrf.mxu0
    %v2124 = vadd.f32 %v2110, %v2123
    %v2125 = vpop.f32.mrf.mxu0
    %v2126 = vadd.f32 %v2112, %v2125
    %2127 = vdwg.mxu0
    %2128 = vmatpush.bf16.msra.mxu0 %v1739
    %2129 = vmatpush.bf16.msra.mxu0 %v1731
    %2130 = vmatpush.bf16.msra.mxu0 %v1723
    %2131 = vmatpush.bf16.msra.mxu0 %v1715
    %2132 = vmatpush.bf16.msra.mxu0 %v1707
    %2133 = vmatpush.bf16.msra.mxu0 %v1699
    %2134 = vmatpush.bf16.msra.mxu0 %v1691
    %2135 = vmatpush.bf16.msra.mxu0 %v1683
    %2136 = vmatmul.bf16.gmra.mxu0 %v1144
    %v2137 = vpop.f32.mrf.mxu0
    %v2138 = vadd.f32 %v1283, %v2137
    %v2139 = vpop.f32.mrf.mxu0
    %v2140 = vadd.f32 %v1283, %v2139
    %2141 = vdwg.mxu0
    %2142 = vmatpush.bf16.msra.mxu0 %v1803
    %2143 = vmatpush.bf16.msra.mxu0 %v1795
    %2144 = vmatpush.bf16.msra.mxu0 %v1787
    %2145 = vmatpush.bf16.msra.mxu0 %v1779
    %2146 = vmatpush.bf16.msra.mxu0 %v1771
    %2147 = vmatpush.bf16.msra.mxu0 %v1763
    %2148 = vmatpush.bf16.msra.mxu0 %v1755
    %2149 = vmatpush.bf16.msra.mxu0 %v1747
    %2150 = vmatmul.bf16.gmra.mxu0 %v1145
    %v2151 = vpop.f32.mrf.mxu0
    %v2152 = vadd.f32 %v2138, %v2151
    %v2153 = vpop.f32.mrf.mxu0
    %v2154 = vadd.f32 %v2140, %v2153
    %2155 = vdwg.mxu0
    %v2156 = vmax.f32 %v1956, 0.0
    %v2157 = vmax.f32 %v1984, 0.0
    %v2158 = vmax.f32 %v2012, 0.0
    %v2159 = vmax.f32 %v2040, 0.0
    %v2160 = vmax.f32 %v2068, 0.0
    %v2161 = vmax.f32 %v2096, 0.0
    %v2162 = vmax.f32 %v2124, 0.0
    %v2163 = vmax.f32 %v2152, 0.0
    %v2164 = vmax.f32 %v1958, 0.0
    %v2165 = vmax.f32 %v1986, 0.0
    %v2166 = vmax.f32 %v2014, 0.0
    %v2167 = vmax.f32 %v2042, 0.0
    %v2168 = vmax.f32 %v2070, 0.0
    %v2169 = vmax.f32 %v2098, 0.0
    %v2170 = vmax.f32 %v2126, 0.0
    %v2171 = vmax.f32 %v2154, 0.0
    %v2172 = vpack.c.bf16 %v2164, %v2156
    %v2173 = vpack.c.bf16 %v2165, %v2157
    %v2174 = vpack.c.bf16 %v2166, %v2158
    %v2175 = vpack.c.bf16 %v2167, %v2159
    %v2176 = vpack.c.bf16 %v2168, %v2160
    %v2177 = vpack.c.bf16 %v2169, %v2161
    %v2178 = vpack.c.bf16 %v2170, %v2162
    %v2179 = vpack.c.bf16 %v2171, %v2163
    %v2180 = vld [vmem:[#allocation11] sm:$0xff]
    %v2181 = vld [vmem:[#allocation11 + $0x8] sm:$0xff]
    %v2182 = vld [vmem:[#allocation11 + $0x10] sm:$0xff]
    %v2183 = vld [vmem:[#allocation11 + $0x18] sm:$0xff]
    %v2184 = vld [vmem:[#allocation11 + $0x20] sm:$0xff]
    %v2185 = vld [vmem:[#allocation11 + $0x28] sm:$0xff]
    %v2186 = vld [vmem:[#allocation11 + $0x30] sm:$0xff]
    %v2187 = vld [vmem:[#allocation11 + $0x38] sm:$0xff]
    %v2188 = vld [vmem:[#allocation11 + $0x40] sm:$0xff]
    %v2189 = vld [vmem:[#allocation11 + $0x48] sm:$0xff]
    %v2190 = vld [vmem:[#allocation11 + $0x50] sm:$0xff]
    %v2191 = vld [vmem:[#allocation11 + $0x58] sm:$0xff]
    %v2192 = vld [vmem:[#allocation11 + $0x60] sm:$0xff]
    %v2193 = vld [vmem:[#allocation11 + $0x68] sm:$0xff]
    %v2194 = vld [vmem:[#allocation11 + $0x70] sm:$0xff]
    %v2195 = vld [vmem:[#allocation11 + $0x78] sm:$0xff]
    %v2196 = vld [vmem:[#allocation11 + $0x80] sm:$0xff]
    %v2197 = vld [vmem:[#allocation11 + $0x88] sm:$0xff]
    %v2198 = vld [vmem:[#allocation11 + $0x90] sm:$0xff]
    %v2199 = vld [vmem:[#allocation11 + $0x98] sm:$0xff]
    %v2200 = vld [vmem:[#allocation11 + $0xa0] sm:$0xff]
    %v2201 = vld [vmem:[#allocation11 + $0xa8] sm:$0xff]
    %v2202 = vld [vmem:[#allocation11 + $0xb0] sm:$0xff]
    %v2203 = vld [vmem:[#allocation11 + $0xb8] sm:$0xff]
    %v2204 = vld [vmem:[#allocation11 + $0xc0] sm:$0xff]
    %v2205 = vld [vmem:[#allocation11 + $0xc8] sm:$0xff]
    %v2206 = vld [vmem:[#allocation11 + $0xd0] sm:$0xff]
    %v2207 = vld [vmem:[#allocation11 + $0xd8] sm:$0xff]
    %v2208 = vld [vmem:[#allocation11 + $0xe0] sm:$0xff]
    %v2209 = vld [vmem:[#allocation11 + $0xe8] sm:$0xff]
    %v2210 = vld [vmem:[#allocation11 + $0xf0] sm:$0xff]
    %v2211 = vld [vmem:[#allocation11 + $0xf8] sm:$0xff]
    %v2212 = vld [vmem:[#allocation11 + $0x100] sm:$0xff]
    %v2213 = vld [vmem:[#allocation11 + $0x108] sm:$0xff]
    %v2214 = vld [vmem:[#allocation11 + $0x110] sm:$0xff]
    %v2215 = vld [vmem:[#allocation11 + $0x118] sm:$0xff]
    %v2216 = vld [vmem:[#allocation11 + $0x120] sm:$0xff]
    %v2217 = vld [vmem:[#allocation11 + $0x128] sm:$0xff]
    %v2218 = vld [vmem:[#allocation11 + $0x130] sm:$0xff]
    %v2219 = vld [vmem:[#allocation11 + $0x138] sm:$0xff]
    %v2220 = vld [vmem:[#allocation11 + $0x140] sm:$0xff]
    %v2221 = vld [vmem:[#allocation11 + $0x148] sm:$0xff]
    %v2222 = vld [vmem:[#allocation11 + $0x150] sm:$0xff]
    %v2223 = vld [vmem:[#allocation11 + $0x158] sm:$0xff]
    %v2224 = vld [vmem:[#allocation11 + $0x160] sm:$0xff]
    %v2225 = vld [vmem:[#allocation11 + $0x168] sm:$0xff]
    %v2226 = vld [vmem:[#allocation11 + $0x170] sm:$0xff]
    %v2227 = vld [vmem:[#allocation11 + $0x178] sm:$0xff]
    %v2228 = vld [vmem:[#allocation11 + $0x180] sm:$0xff]
    %v2229 = vld [vmem:[#allocation11 + $0x188] sm:$0xff]
    %v2230 = vld [vmem:[#allocation11 + $0x190] sm:$0xff]
    %v2231 = vld [vmem:[#allocation11 + $0x198] sm:$0xff]
    %v2232 = vld [vmem:[#allocation11 + $0x1a0] sm:$0xff]
    %v2233 = vld [vmem:[#allocation11 + $0x1a8] sm:$0xff]
    %v2234 = vld [vmem:[#allocation11 + $0x1b0] sm:$0xff]
    %v2235 = vld [vmem:[#allocation11 + $0x1b8] sm:$0xff]
    %v2236 = vld [vmem:[#allocation11 + $0x1c0] sm:$0xff]
    %v2237 = vld [vmem:[#allocation11 + $0x1c8] sm:$0xff]
    %v2238 = vld [vmem:[#allocation11 + $0x1d0] sm:$0xff]
    %v2239 = vld [vmem:[#allocation11 + $0x1d8] sm:$0xff]
    %v2240 = vld [vmem:[#allocation11 + $0x1e0] sm:$0xff]
    %v2241 = vld [vmem:[#allocation11 + $0x1e8] sm:$0xff]
    %v2242 = vld [vmem:[#allocation11 + $0x1f0] sm:$0xff]
    %v2243 = vld [vmem:[#allocation11 + $0x1f8] sm:$0xff]
    %v2244 = vld [vmem:[#allocation11 + $0x200] sm:$0xff]
    %v2245 = vld [vmem:[#allocation11 + $0x208] sm:$0xff]
    %v2246 = vld [vmem:[#allocation11 + $0x210] sm:$0xff]
    %v2247 = vld [vmem:[#allocation11 + $0x218] sm:$0xff]
    %v2248 = vld [vmem:[#allocation11 + $0x220] sm:$0xff]
    %v2249 = vld [vmem:[#allocation11 + $0x228] sm:$0xff]
    %v2250 = vld [vmem:[#allocation11 + $0x230] sm:$0xff]
    %v2251 = vld [vmem:[#allocation11 + $0x238] sm:$0xff]
    %v2252 = vld [vmem:[#allocation11 + $0x240] sm:$0xff]
    %v2253 = vld [vmem:[#allocation11 + $0x248] sm:$0xff]
    %v2254 = vld [vmem:[#allocation11 + $0x250] sm:$0xff]
    %v2255 = vld [vmem:[#allocation11 + $0x258] sm:$0xff]
    %v2256 = vld [vmem:[#allocation11 + $0x260] sm:$0xff]
    %v2257 = vld [vmem:[#allocation11 + $0x268] sm:$0xff]
    %v2258 = vld [vmem:[#allocation11 + $0x270] sm:$0xff]
    %v2259 = vld [vmem:[#allocation11 + $0x278] sm:$0xff]
    %v2260 = vld [vmem:[#allocation11 + $0x280] sm:$0xff]
    %v2261 = vld [vmem:[#allocation11 + $0x288] sm:$0xff]
    %v2262 = vld [vmem:[#allocation11 + $0x290] sm:$0xff]
    %v2263 = vld [vmem:[#allocation11 + $0x298] sm:$0xff]
    %v2264 = vld [vmem:[#allocation11 + $0x2a0] sm:$0xff]
    %v2265 = vld [vmem:[#allocation11 + $0x2a8] sm:$0xff]
    %v2266 = vld [vmem:[#allocation11 + $0x2b0] sm:$0xff]
    %v2267 = vld [vmem:[#allocation11 + $0x2b8] sm:$0xff]
    %v2268 = vld [vmem:[#allocation11 + $0x2c0] sm:$0xff]
    %v2269 = vld [vmem:[#allocation11 + $0x2c8] sm:$0xff]
    %v2270 = vld [vmem:[#allocation11 + $0x2d0] sm:$0xff]
    %v2271 = vld [vmem:[#allocation11 + $0x2d8] sm:$0xff]
    %v2272 = vld [vmem:[#allocation11 + $0x2e0] sm:$0xff]
    %v2273 = vld [vmem:[#allocation11 + $0x2e8] sm:$0xff]
    %v2274 = vld [vmem:[#allocation11 + $0x2f0] sm:$0xff]
    %v2275 = vld [vmem:[#allocation11 + $0x2f8] sm:$0xff]
    %v2276 = vld [vmem:[#allocation11 + $0x300] sm:$0xff]
    %v2277 = vld [vmem:[#allocation11 + $0x308] sm:$0xff]
    %v2278 = vld [vmem:[#allocation11 + $0x310] sm:$0xff]
    %v2279 = vld [vmem:[#allocation11 + $0x318] sm:$0xff]
    %v2280 = vld [vmem:[#allocation11 + $0x320] sm:$0xff]
    %v2281 = vld [vmem:[#allocation11 + $0x328] sm:$0xff]
    %v2282 = vld [vmem:[#allocation11 + $0x330] sm:$0xff]
    %v2283 = vld [vmem:[#allocation11 + $0x338] sm:$0xff]
    %v2284 = vld [vmem:[#allocation11 + $0x340] sm:$0xff]
    %v2285 = vld [vmem:[#allocation11 + $0x348] sm:$0xff]
    %v2286 = vld [vmem:[#allocation11 + $0x350] sm:$0xff]
    %v2287 = vld [vmem:[#allocation11 + $0x358] sm:$0xff]
    %v2288 = vld [vmem:[#allocation11 + $0x360] sm:$0xff]
    %v2289 = vld [vmem:[#allocation11 + $0x368] sm:$0xff]
    %v2290 = vld [vmem:[#allocation11 + $0x370] sm:$0xff]
    %v2291 = vld [vmem:[#allocation11 + $0x378] sm:$0xff]
    %v2292 = vld [vmem:[#allocation11 + $0x380] sm:$0xff]
    %v2293 = vld [vmem:[#allocation11 + $0x388] sm:$0xff]
    %v2294 = vld [vmem:[#allocation11 + $0x390] sm:$0xff]
    %v2295 = vld [vmem:[#allocation11 + $0x398] sm:$0xff]
    %v2296 = vld [vmem:[#allocation11 + $0x3a0] sm:$0xff]
    %v2297 = vld [vmem:[#allocation11 + $0x3a8] sm:$0xff]
    %v2298 = vld [vmem:[#allocation11 + $0x3b0] sm:$0xff]
    %v2299 = vld [vmem:[#allocation11 + $0x3b8] sm:$0xff]
    %v2300 = vld [vmem:[#allocation11 + $0x3c0] sm:$0xff]
    %v2301 = vld [vmem:[#allocation11 + $0x3c8] sm:$0xff]
    %v2302 = vld [vmem:[#allocation11 + $0x3d0] sm:$0xff]
    %v2303 = vld [vmem:[#allocation11 + $0x3d8] sm:$0xff]
    %v2304 = vld [vmem:[#allocation11 + $0x3e0] sm:$0xff]
    %v2305 = vld [vmem:[#allocation11 + $0x3e8] sm:$0xff]
    %v2306 = vld [vmem:[#allocation11 + $0x3f0] sm:$0xff]
    %v2307 = vld [vmem:[#allocation11 + $0x3f8] sm:$0xff]
    %v2308 = vld [vmem:[%s6] sm:$0x3]
    %v2310 = vperm.slane %v2308, 0
    %v2311 = vperm.slane %v2308, 1
    %v2442 = vunpack.c.l.b16 %v2180
    %v2443 = vunpack.c.h.b16 %v2180
    %v2444 = vunpack.c.l.b16 %v2181
    %v2445 = vunpack.c.h.b16 %v2181
    %v2446 = vunpack.c.l.b16 %v2182
    %v2447 = vunpack.c.h.b16 %v2182
    %v2448 = vunpack.c.l.b16 %v2183
    %v2449 = vunpack.c.h.b16 %v2183
    %v2450 = vunpack.c.l.b16 %v2184
    %v2451 = vunpack.c.h.b16 %v2184
    %v2452 = vunpack.c.l.b16 %v2185
    %v2453 = vunpack.c.h.b16 %v2185
    %v2454 = vunpack.c.l.b16 %v2186
    %v2455 = vunpack.c.h.b16 %v2186
    %v2456 = vunpack.c.l.b16 %v2187
    %v2457 = vunpack.c.h.b16 %v2187
    %v2458 = vunpack.c.l.b16 %v2188
    %v2459 = vunpack.c.h.b16 %v2188
    %v2460 = vunpack.c.l.b16 %v2189
    %v2461 = vunpack.c.h.b16 %v2189
    %v2462 = vunpack.c.l.b16 %v2190
    %v2463 = vunpack.c.h.b16 %v2190
    %v2464 = vunpack.c.l.b16 %v2191
    %v2465 = vunpack.c.h.b16 %v2191
    %v2466 = vunpack.c.l.b16 %v2192
    %v2467 = vunpack.c.h.b16 %v2192
    %v2468 = vunpack.c.l.b16 %v2193
    %v2469 = vunpack.c.h.b16 %v2193
    %v2470 = vunpack.c.l.b16 %v2194
    %v2471 = vunpack.c.h.b16 %v2194
    %v2472 = vunpack.c.l.b16 %v2195
    %v2473 = vunpack.c.h.b16 %v2195
    %v2474 = vunpack.c.l.b16 %v2196
    %v2475 = vunpack.c.h.b16 %v2196
    %v2476 = vunpack.c.l.b16 %v2197
    %v2477 = vunpack.c.h.b16 %v2197
    %v2478 = vunpack.c.l.b16 %v2198
    %v2479 = vunpack.c.h.b16 %v2198
    %v2480 = vunpack.c.l.b16 %v2199
    %v2481 = vunpack.c.h.b16 %v2199
    %v2482 = vunpack.c.l.b16 %v2200
    %v2483 = vunpack.c.h.b16 %v2200
    %v2484 = vunpack.c.l.b16 %v2201
    %v2485 = vunpack.c.h.b16 %v2201
    %v2486 = vunpack.c.l.b16 %v2202
    %v2487 = vunpack.c.h.b16 %v2202
    %v2488 = vunpack.c.l.b16 %v2203
    %v2489 = vunpack.c.h.b16 %v2203
    %v2490 = vunpack.c.l.b16 %v2204
    %v2491 = vunpack.c.h.b16 %v2204
    %v2492 = vunpack.c.l.b16 %v2205
    %v2493 = vunpack.c.h.b16 %v2205
    %v2494 = vunpack.c.l.b16 %v2206
    %v2495 = vunpack.c.h.b16 %v2206
    %v2496 = vunpack.c.l.b16 %v2207
    %v2497 = vunpack.c.h.b16 %v2207
    %v2498 = vunpack.c.l.b16 %v2208
    %v2499 = vunpack.c.h.b16 %v2208
    %v2500 = vunpack.c.l.b16 %v2209
    %v2501 = vunpack.c.h.b16 %v2209
    %v2502 = vunpack.c.l.b16 %v2210
    %v2503 = vunpack.c.h.b16 %v2210
    %v2504 = vunpack.c.l.b16 %v2211
    %v2505 = vunpack.c.h.b16 %v2211
    %v2506 = vunpack.c.l.b16 %v2212
    %v2507 = vunpack.c.h.b16 %v2212
    %v2508 = vunpack.c.l.b16 %v2213
    %v2509 = vunpack.c.h.b16 %v2213
    %v2510 = vunpack.c.l.b16 %v2214
    %v2511 = vunpack.c.h.b16 %v2214
    %v2512 = vunpack.c.l.b16 %v2215
    %v2513 = vunpack.c.h.b16 %v2215
    %v2514 = vunpack.c.l.b16 %v2216
    %v2515 = vunpack.c.h.b16 %v2216
    %v2516 = vunpack.c.l.b16 %v2217
    %v2517 = vunpack.c.h.b16 %v2217
    %v2518 = vunpack.c.l.b16 %v2218
    %v2519 = vunpack.c.h.b16 %v2218
    %v2520 = vunpack.c.l.b16 %v2219
    %v2521 = vunpack.c.h.b16 %v2219
    %v2522 = vunpack.c.l.b16 %v2220
    %v2523 = vunpack.c.h.b16 %v2220
    %v2524 = vunpack.c.l.b16 %v2221
    %v2525 = vunpack.c.h.b16 %v2221
    %v2526 = vunpack.c.l.b16 %v2222
    %v2527 = vunpack.c.h.b16 %v2222
    %v2528 = vunpack.c.l.b16 %v2223
    %v2529 = vunpack.c.h.b16 %v2223
    %v2530 = vunpack.c.l.b16 %v2224
    %v2531 = vunpack.c.h.b16 %v2224
    %v2532 = vunpack.c.l.b16 %v2225
    %v2533 = vunpack.c.h.b16 %v2225
    %v2534 = vunpack.c.l.b16 %v2226
    %v2535 = vunpack.c.h.b16 %v2226
    %v2536 = vunpack.c.l.b16 %v2227
    %v2537 = vunpack.c.h.b16 %v2227
    %v2538 = vunpack.c.l.b16 %v2228
    %v2539 = vunpack.c.h.b16 %v2228
    %v2540 = vunpack.c.l.b16 %v2229
    %v2541 = vunpack.c.h.b16 %v2229
    %v2542 = vunpack.c.l.b16 %v2230
    %v2543 = vunpack.c.h.b16 %v2230
    %v2544 = vunpack.c.l.b16 %v2231
    %v2545 = vunpack.c.h.b16 %v2231
    %v2546 = vunpack.c.l.b16 %v2232
    %v2547 = vunpack.c.h.b16 %v2232
    %v2548 = vunpack.c.l.b16 %v2233
    %v2549 = vunpack.c.h.b16 %v2233
    %v2550 = vunpack.c.l.b16 %v2234
    %v2551 = vunpack.c.h.b16 %v2234
    %v2552 = vunpack.c.l.b16 %v2235
    %v2553 = vunpack.c.h.b16 %v2235
    %v2554 = vunpack.c.l.b16 %v2236
    %v2555 = vunpack.c.h.b16 %v2236
    %v2556 = vunpack.c.l.b16 %v2237
    %v2557 = vunpack.c.h.b16 %v2237
    %v2558 = vunpack.c.l.b16 %v2238
    %v2559 = vunpack.c.h.b16 %v2238
    %v2560 = vunpack.c.l.b16 %v2239
    %v2561 = vunpack.c.h.b16 %v2239
    %v2562 = vunpack.c.l.b16 %v2240
    %v2563 = vunpack.c.h.b16 %v2240
    %v2564 = vunpack.c.l.b16 %v2241
    %v2565 = vunpack.c.h.b16 %v2241
    %v2566 = vunpack.c.l.b16 %v2242
    %v2567 = vunpack.c.h.b16 %v2242
    %v2568 = vunpack.c.l.b16 %v2243
    %v2569 = vunpack.c.h.b16 %v2243
    %v2570 = vunpack.c.l.b16 %v2244
    %v2571 = vunpack.c.h.b16 %v2244
    %v2572 = vunpack.c.l.b16 %v2245
    %v2573 = vunpack.c.h.b16 %v2245
    %v2574 = vunpack.c.l.b16 %v2246
    %v2575 = vunpack.c.h.b16 %v2246
    %v2576 = vunpack.c.l.b16 %v2247
    %v2577 = vunpack.c.h.b16 %v2247
    %v2578 = vunpack.c.l.b16 %v2248
    %v2579 = vunpack.c.h.b16 %v2248
    %v2580 = vunpack.c.l.b16 %v2249
    %v2581 = vunpack.c.h.b16 %v2249
    %v2582 = vunpack.c.l.b16 %v2250
    %v2583 = vunpack.c.h.b16 %v2250
    %v2584 = vunpack.c.l.b16 %v2251
    %v2585 = vunpack.c.h.b16 %v2251
    %v2586 = vunpack.c.l.b16 %v2252
    %v2587 = vunpack.c.h.b16 %v2252
    %v2588 = vunpack.c.l.b16 %v2253
    %v2589 = vunpack.c.h.b16 %v2253
    %v2590 = vunpack.c.l.b16 %v2254
    %v2591 = vunpack.c.h.b16 %v2254
    %v2592 = vunpack.c.l.b16 %v2255
    %v2593 = vunpack.c.h.b16 %v2255
    %v2594 = vunpack.c.l.b16 %v2256
    %v2595 = vunpack.c.h.b16 %v2256
    %v2596 = vunpack.c.l.b16 %v2257
    %v2597 = vunpack.c.h.b16 %v2257
    %v2598 = vunpack.c.l.b16 %v2258
    %v2599 = vunpack.c.h.b16 %v2258
    %v2600 = vunpack.c.l.b16 %v2259
    %v2601 = vunpack.c.h.b16 %v2259
    %v2602 = vunpack.c.l.b16 %v2260
    %v2603 = vunpack.c.h.b16 %v2260
    %v2604 = vunpack.c.l.b16 %v2261
    %v2605 = vunpack.c.h.b16 %v2261
    %v2606 = vunpack.c.l.b16 %v2262
    %v2607 = vunpack.c.h.b16 %v2262
    %v2608 = vunpack.c.l.b16 %v2263
    %v2609 = vunpack.c.h.b16 %v2263
    %v2610 = vunpack.c.l.b16 %v2264
    %v2611 = vunpack.c.h.b16 %v2264
    %v2612 = vunpack.c.l.b16 %v2265
    %v2613 = vunpack.c.h.b16 %v2265
    %v2614 = vunpack.c.l.b16 %v2266
    %v2615 = vunpack.c.h.b16 %v2266
    %v2616 = vunpack.c.l.b16 %v2267
    %v2617 = vunpack.c.h.b16 %v2267
    %v2618 = vunpack.c.l.b16 %v2268
    %v2619 = vunpack.c.h.b16 %v2268
    %v2620 = vunpack.c.l.b16 %v2269
    %v2621 = vunpack.c.h.b16 %v2269
    %v2622 = vunpack.c.l.b16 %v2270
    %v2623 = vunpack.c.h.b16 %v2270
    %v2624 = vunpack.c.l.b16 %v2271
    %v2625 = vunpack.c.h.b16 %v2271
    %v2626 = vunpack.c.l.b16 %v2272
    %v2627 = vunpack.c.h.b16 %v2272
    %v2628 = vunpack.c.l.b16 %v2273
    %v2629 = vunpack.c.h.b16 %v2273
    %v2630 = vunpack.c.l.b16 %v2274
    %v2631 = vunpack.c.h.b16 %v2274
    %v2632 = vunpack.c.l.b16 %v2275
    %v2633 = vunpack.c.h.b16 %v2275
    %v2634 = vunpack.c.l.b16 %v2276
    %v2635 = vunpack.c.h.b16 %v2276
    %v2636 = vunpack.c.l.b16 %v2277
    %v2637 = vunpack.c.h.b16 %v2277
    %v2638 = vunpack.c.l.b16 %v2278
    %v2639 = vunpack.c.h.b16 %v2278
    %v2640 = vunpack.c.l.b16 %v2279
    %v2641 = vunpack.c.h.b16 %v2279
    %v2642 = vunpack.c.l.b16 %v2280
    %v2643 = vunpack.c.h.b16 %v2280
    %v2644 = vunpack.c.l.b16 %v2281
    %v2645 = vunpack.c.h.b16 %v2281
    %v2646 = vunpack.c.l.b16 %v2282
    %v2647 = vunpack.c.h.b16 %v2282
    %v2648 = vunpack.c.l.b16 %v2283
    %v2649 = vunpack.c.h.b16 %v2283
    %v2650 = vunpack.c.l.b16 %v2284
    %v2651 = vunpack.c.h.b16 %v2284
    %v2652 = vunpack.c.l.b16 %v2285
    %v2653 = vunpack.c.h.b16 %v2285
    %v2654 = vunpack.c.l.b16 %v2286
    %v2655 = vunpack.c.h.b16 %v2286
    %v2656 = vunpack.c.l.b16 %v2287
    %v2657 = vunpack.c.h.b16 %v2287
    %v2658 = vunpack.c.l.b16 %v2288
    %v2659 = vunpack.c.h.b16 %v2288
    %v2660 = vunpack.c.l.b16 %v2289
    %v2661 = vunpack.c.h.b16 %v2289
    %v2662 = vunpack.c.l.b16 %v2290
    %v2663 = vunpack.c.h.b16 %v2290
    %v2664 = vunpack.c.l.b16 %v2291
    %v2665 = vunpack.c.h.b16 %v2291
    %v2666 = vunpack.c.l.b16 %v2292
    %v2667 = vunpack.c.h.b16 %v2292
    %v2668 = vunpack.c.l.b16 %v2293
    %v2669 = vunpack.c.h.b16 %v2293
    %v2670 = vunpack.c.l.b16 %v2294
    %v2671 = vunpack.c.h.b16 %v2294
    %v2672 = vunpack.c.l.b16 %v2295
    %v2673 = vunpack.c.h.b16 %v2295
    %v2674 = vunpack.c.l.b16 %v2296
    %v2675 = vunpack.c.h.b16 %v2296
    %v2676 = vunpack.c.l.b16 %v2297
    %v2677 = vunpack.c.h.b16 %v2297
    %v2678 = vunpack.c.l.b16 %v2298
    %v2679 = vunpack.c.h.b16 %v2298
    %v2680 = vunpack.c.l.b16 %v2299
    %v2681 = vunpack.c.h.b16 %v2299
    %v2682 = vunpack.c.l.b16 %v2300
    %v2683 = vunpack.c.h.b16 %v2300
    %v2684 = vunpack.c.l.b16 %v2301
    %v2685 = vunpack.c.h.b16 %v2301
    %v2686 = vunpack.c.l.b16 %v2302
    %v2687 = vunpack.c.h.b16 %v2302
    %v2688 = vunpack.c.l.b16 %v2303
    %v2689 = vunpack.c.h.b16 %v2303
    %v2690 = vunpack.c.l.b16 %v2304
    %v2691 = vunpack.c.h.b16 %v2304
    %v2692 = vunpack.c.l.b16 %v2305
    %v2693 = vunpack.c.h.b16 %v2305
    %v2694 = vunpack.c.l.b16 %v2306
    %v2695 = vunpack.c.h.b16 %v2306
    %v2696 = vunpack.c.l.b16 %v2307
    %v2697 = vunpack.c.h.b16 %v2307
    %v2698 = vpack.c.b16 %v2444, %v2442
    %v2699 = vpack.c.b16 %v2445, %v2443
    %v2700 = vpack.c.b16 %v2448, %v2446
    %v2701 = vpack.c.b16 %v2449, %v2447
    %v2702 = vpack.c.b16 %v2452, %v2450
    %v2703 = vpack.c.b16 %v2453, %v2451
    %v2704 = vpack.c.b16 %v2456, %v2454
    %v2705 = vpack.c.b16 %v2457, %v2455
    %v2706 = vpack.c.b16 %v2460, %v2458
    %v2707 = vpack.c.b16 %v2461, %v2459
    %v2708 = vpack.c.b16 %v2464, %v2462
    %v2709 = vpack.c.b16 %v2465, %v2463
    %v2710 = vpack.c.b16 %v2468, %v2466
    %v2711 = vpack.c.b16 %v2469, %v2467
    %v2712 = vpack.c.b16 %v2472, %v2470
    %v2713 = vpack.c.b16 %v2473, %v2471
    %v2714 = vpack.c.b16 %v2476, %v2474
    %v2715 = vpack.c.b16 %v2477, %v2475
    %v2716 = vpack.c.b16 %v2480, %v2478
    %v2717 = vpack.c.b16 %v2481, %v2479
    %v2718 = vpack.c.b16 %v2484, %v2482
    %v2719 = vpack.c.b16 %v2485, %v2483
    %v2720 = vpack.c.b16 %v2488, %v2486
    %v2721 = vpack.c.b16 %v2489, %v2487
    %v2722 = vpack.c.b16 %v2492, %v2490
    %v2723 = vpack.c.b16 %v2493, %v2491
    %v2724 = vpack.c.b16 %v2496, %v2494
    %v2725 = vpack.c.b16 %v2497, %v2495
    %v2726 = vpack.c.b16 %v2500, %v2498
    %v2727 = vpack.c.b16 %v2501, %v2499
    %v2728 = vpack.c.b16 %v2504, %v2502
    %v2729 = vpack.c.b16 %v2505, %v2503
    %v2730 = vpack.c.b16 %v2508, %v2506
    %v2731 = vpack.c.b16 %v2509, %v2507
    %v2732 = vpack.c.b16 %v2512, %v2510
    %v2733 = vpack.c.b16 %v2513, %v2511
    %v2734 = vpack.c.b16 %v2516, %v2514
    %v2735 = vpack.c.b16 %v2517, %v2515
    %v2736 = vpack.c.b16 %v2520, %v2518
    %v2737 = vpack.c.b16 %v2521, %v2519
    %v2738 = vpack.c.b16 %v2524, %v2522
    %v2739 = vpack.c.b16 %v2525, %v2523
    %v2740 = vpack.c.b16 %v2528, %v2526
    %v2741 = vpack.c.b16 %v2529, %v2527
    %v2742 = vpack.c.b16 %v2532, %v2530
    %v2743 = vpack.c.b16 %v2533, %v2531
    %v2744 = vpack.c.b16 %v2536, %v2534
    %v2745 = vpack.c.b16 %v2537, %v2535
    %v2746 = vpack.c.b16 %v2540, %v2538
    %v2747 = vpack.c.b16 %v2541, %v2539
    %v2748 = vpack.c.b16 %v2544, %v2542
    %v2749 = vpack.c.b16 %v2545, %v2543
    %v2750 = vpack.c.b16 %v2548, %v2546
    %v2751 = vpack.c.b16 %v2549, %v2547
    %v2752 = vpack.c.b16 %v2552, %v2550
    %v2753 = vpack.c.b16 %v2553, %v2551
    %v2754 = vpack.c.b16 %v2556, %v2554
    %v2755 = vpack.c.b16 %v2557, %v2555
    %v2756 = vpack.c.b16 %v2560, %v2558
    %v2757 = vpack.c.b16 %v2561, %v2559
    %v2758 = vpack.c.b16 %v2564, %v2562
    %v2759 = vpack.c.b16 %v2565, %v2563
    %v2760 = vpack.c.b16 %v2568, %v2566
    %v2761 = vpack.c.b16 %v2569, %v2567
    %v2762 = vpack.c.b16 %v2572, %v2570
    %v2763 = vpack.c.b16 %v2573, %v2571
    %v2764 = vpack.c.b16 %v2576, %v2574
    %v2765 = vpack.c.b16 %v2577, %v2575
    %v2766 = vpack.c.b16 %v2580, %v2578
    %v2767 = vpack.c.b16 %v2581, %v2579
    %v2768 = vpack.c.b16 %v2584, %v2582
    %v2769 = vpack.c.b16 %v2585, %v2583
    %v2770 = vpack.c.b16 %v2588, %v2586
    %v2771 = vpack.c.b16 %v2589, %v2587
    %v2772 = vpack.c.b16 %v2592, %v2590
    %v2773 = vpack.c.b16 %v2593, %v2591
    %v2774 = vpack.c.b16 %v2596, %v2594
    %v2775 = vpack.c.b16 %v2597, %v2595
    %v2776 = vpack.c.b16 %v2600, %v2598
    %v2777 = vpack.c.b16 %v2601, %v2599
    %v2778 = vpack.c.b16 %v2604, %v2602
    %v2779 = vpack.c.b16 %v2605, %v2603
    %v2780 = vpack.c.b16 %v2608, %v2606
    %v2781 = vpack.c.b16 %v2609, %v2607
    %v2782 = vpack.c.b16 %v2612, %v2610
    %v2783 = vpack.c.b16 %v2613, %v2611
    %v2784 = vpack.c.b16 %v2616, %v2614
    %v2785 = vpack.c.b16 %v2617, %v2615
    %v2786 = vpack.c.b16 %v2620, %v2618
    %v2787 = vpack.c.b16 %v2621, %v2619
    %v2788 = vpack.c.b16 %v2624, %v2622
    %v2789 = vpack.c.b16 %v2625, %v2623
    %v2790 = vpack.c.b16 %v2628, %v2626
    %v2791 = vpack.c.b16 %v2629, %v2627
    %v2792 = vpack.c.b16 %v2632, %v2630
    %v2793 = vpack.c.b16 %v2633, %v2631
    %v2794 = vpack.c.b16 %v2636, %v2634
    %v2795 = vpack.c.b16 %v2637, %v2635
    %v2796 = vpack.c.b16 %v2640, %v2638
    %v2797 = vpack.c.b16 %v2641, %v2639
    %v2798 = vpack.c.b16 %v2644, %v2642
    %v2799 = vpack.c.b16 %v2645, %v2643
    %v2800 = vpack.c.b16 %v2648, %v2646
    %v2801 = vpack.c.b16 %v2649, %v2647
    %v2802 = vpack.c.b16 %v2652, %v2650
    %v2803 = vpack.c.b16 %v2653, %v2651
    %v2804 = vpack.c.b16 %v2656, %v2654
    %v2805 = vpack.c.b16 %v2657, %v2655
    %v2806 = vpack.c.b16 %v2660, %v2658
    %v2807 = vpack.c.b16 %v2661, %v2659
    %v2808 = vpack.c.b16 %v2664, %v2662
    %v2809 = vpack.c.b16 %v2665, %v2663
    %v2810 = vpack.c.b16 %v2668, %v2666
    %v2811 = vpack.c.b16 %v2669, %v2667
    %v2812 = vpack.c.b16 %v2672, %v2670
    %v2813 = vpack.c.b16 %v2673, %v2671
    %v2814 = vpack.c.b16 %v2676, %v2674
    %v2815 = vpack.c.b16 %v2677, %v2675
    %v2816 = vpack.c.b16 %v2680, %v2678
    %v2817 = vpack.c.b16 %v2681, %v2679
    %v2818 = vpack.c.b16 %v2684, %v2682
    %v2819 = vpack.c.b16 %v2685, %v2683
    %v2820 = vpack.c.b16 %v2688, %v2686
    %v2821 = vpack.c.b16 %v2689, %v2687
    %v2822 = vpack.c.b16 %v2692, %v2690
    %v2823 = vpack.c.b16 %v2693, %v2691
    %v2824 = vpack.c.b16 %v2696, %v2694
    %v2825 = vpack.c.b16 %v2697, %v2695
    %2954 = vmatpush.bf16.msra.mxu0 %v2712
    %2955 = vmatpush.bf16.msra.mxu0 %v2710
    %2956 = vmatpush.bf16.msra.mxu0 %v2708
    %2957 = vmatpush.bf16.msra.mxu0 %v2706
    %2958 = vmatpush.bf16.msra.mxu0 %v2704
    %2959 = vmatpush.bf16.msra.mxu0 %v2702
    %2960 = vmatpush.bf16.msra.mxu0 %v2700
    %2961 = vmatpush.bf16.msra.mxu0 %v2698
    %2962 = vmatmul.bf16.gmra.mxu0 %v2172
    %v2963 = vpop.f32.mrf.mxu0
    %v2964 = vadd.f32 %v2310, %v2963
    %v2965 = vpop.f32.mrf.mxu0
    %v2966 = vadd.f32 %v2310, %v2965
    %2967 = vdwg.mxu0
    %2968 = vmatpush.bf16.msra.mxu0 %v2728
    %2969 = vmatpush.bf16.msra.mxu0 %v2726
    %2970 = vmatpush.bf16.msra.mxu0 %v2724
    %2971 = vmatpush.bf16.msra.mxu0 %v2722
    %2972 = vmatpush.bf16.msra.mxu0 %v2720
    %2973 = vmatpush.bf16.msra.mxu0 %v2718
    %2974 = vmatpush.bf16.msra.mxu0 %v2716
    %2975 = vmatpush.bf16.msra.mxu0 %v2714
    %2976 = vmatmul.bf16.gmra.mxu0 %v2173
    %v2977 = vpop.f32.mrf.mxu0
    %v2978 = vadd.f32 %v2964, %v2977
    %v2979 = vpop.f32.mrf.mxu0
    %v2980 = vadd.f32 %v2966, %v2979
    %2981 = vdwg.mxu0
    %2982 = vmatpush.bf16.msra.mxu0 %v2744
    %2983 = vmatpush.bf16.msra.mxu0 %v2742
    %2984 = vmatpush.bf16.msra.mxu0 %v2740
    %2985 = vmatpush.bf16.msra.mxu0 %v2738
    %2986 = vmatpush.bf16.msra.mxu0 %v2736
    %2987 = vmatpush.bf16.msra.mxu0 %v2734
    %2988 = vmatpush.bf16.msra.mxu0 %v2732
    %2989 = vmatpush.bf16.msra.mxu0 %v2730
    %2990 = vmatmul.bf16.gmra.mxu0 %v2174
    %v2991 = vpop.f32.mrf.mxu0
    %v2992 = vadd.f32 %v2978, %v2991
    %v2993 = vpop.f32.mrf.mxu0
    %v2994 = vadd.f32 %v2980, %v2993
    %2995 = vdwg.mxu0
    %2996 = vmatpush.bf16.msra.mxu0 %v2760
    %2997 = vmatpush.bf16.msra.mxu0 %v2758
    %2998 = vmatpush.bf16.msra.mxu0 %v2756
    %2999 = vmatpush.bf16.msra.mxu0 %v2754
    %3000 = vmatpush.bf16.msra.mxu0 %v2752
    %3001 = vmatpush.bf16.msra.mxu0 %v2750
    %3002 = vmatpush.bf16.msra.mxu0 %v2748
    %3003 = vmatpush.bf16.msra.mxu0 %v2746
    %3004 = vmatmul.bf16.gmra.mxu0 %v2175
    %v3005 = vpop.f32.mrf.mxu0
    %v3006 = vadd.f32 %v2992, %v3005
    %v3007 = vpop.f32.mrf.mxu0
    %v3008 = vadd.f32 %v2994, %v3007
    %3009 = vdwg.mxu0
    %3010 = vmatpush.bf16.msra.mxu0 %v2776
    %3011 = vmatpush.bf16.msra.mxu0 %v2774
    %3012 = vmatpush.bf16.msra.mxu0 %v2772
    %3013 = vmatpush.bf16.msra.mxu0 %v2770
    %3014 = vmatpush.bf16.msra.mxu0 %v2768
    %3015 = vmatpush.bf16.msra.mxu0 %v2766
    %3016 = vmatpush.bf16.msra.mxu0 %v2764
    %3017 = vmatpush.bf16.msra.mxu0 %v2762
    %3018 = vmatmul.bf16.gmra.mxu0 %v2176
    %v3019 = vpop.f32.mrf.mxu0
    %v3020 = vadd.f32 %v3006, %v3019
    %v3021 = vpop.f32.mrf.mxu0
    %v3022 = vadd.f32 %v3008, %v3021
    %3023 = vdwg.mxu0
    %3024 = vmatpush.bf16.msra.mxu0 %v2792
    %3025 = vmatpush.bf16.msra.mxu0 %v2790
    %3026 = vmatpush.bf16.msra.mxu0 %v2788
    %3027 = vmatpush.bf16.msra.mxu0 %v2786
    %3028 = vmatpush.bf16.msra.mxu0 %v2784
    %3029 = vmatpush.bf16.msra.mxu0 %v2782
    %3030 = vmatpush.bf16.msra.mxu0 %v2780
    %3031 = vmatpush.bf16.msra.mxu0 %v2778
    %3032 = vmatmul.bf16.gmra.mxu0 %v2177
    %v3033 = vpop.f32.mrf.mxu0
    %v3034 = vadd.f32 %v3020, %v3033
    %v3035 = vpop.f32.mrf.mxu0
    %v3036 = vadd.f32 %v3022, %v3035
    %3037 = vdwg.mxu0
    %3038 = vmatpush.bf16.msra.mxu0 %v2808
    %3039 = vmatpush.bf16.msra.mxu0 %v2806
    %3040 = vmatpush.bf16.msra.mxu0 %v2804
    %3041 = vmatpush.bf16.msra.mxu0 %v2802
    %3042 = vmatpush.bf16.msra.mxu0 %v2800
    %3043 = vmatpush.bf16.msra.mxu0 %v2798
    %3044 = vmatpush.bf16.msra.mxu0 %v2796
    %3045 = vmatpush.bf16.msra.mxu0 %v2794
    %3046 = vmatmul.bf16.gmra.mxu0 %v2178
    %v3047 = vpop.f32.mrf.mxu0
    %v3048 = vadd.f32 %v3034, %v3047
    %v3049 = vpop.f32.mrf.mxu0
    %v3050 = vadd.f32 %v3036, %v3049
    %3051 = vdwg.mxu0
    %3052 = vmatpush.bf16.msra.mxu0 %v2824
    %3053 = vmatpush.bf16.msra.mxu0 %v2822
    %3054 = vmatpush.bf16.msra.mxu0 %v2820
    %3055 = vmatpush.bf16.msra.mxu0 %v2818
    %3056 = vmatpush.bf16.msra.mxu0 %v2816
    %3057 = vmatpush.bf16.msra.mxu0 %v2814
    %3058 = vmatpush.bf16.msra.mxu0 %v2812
    %3059 = vmatpush.bf16.msra.mxu0 %v2810
    %3060 = vmatmul.bf16.gmra.mxu0 %v2179
    %v3061 = vpop.f32.mrf.mxu0
    %v3062 = vadd.f32 %v3048, %v3061
    %v3063 = vpop.f32.mrf.mxu0
    %v3064 = vadd.f32 %v3050, %v3063
    %3065 = vdwg.mxu0
    %3066 = vmatpush.bf16.msra.mxu0 %v2713
    %3067 = vmatpush.bf16.msra.mxu0 %v2711
    %3068 = vmatpush.bf16.msra.mxu0 %v2709
    %3069 = vmatpush.bf16.msra.mxu0 %v2707
    %3070 = vmatpush.bf16.msra.mxu0 %v2705
    %3071 = vmatpush.bf16.msra.mxu0 %v2703
    %3072 = vmatpush.bf16.msra.mxu0 %v2701
    %3073 = vmatpush.bf16.msra.mxu0 %v2699
    %3074 = vmatmul.bf16.gmra.mxu0 %v2172
    %v3075 = vpop.f32.mrf.mxu0
    %v3076 = vadd.f32 %v2311, %v3075
    %v3077 = vpop.f32.mrf.mxu0
    %v3078 = vadd.f32 %v2311, %v3077
    %3079 = vdwg.mxu0
    %3080 = vmatpush.bf16.msra.mxu0 %v2729
    %3081 = vmatpush.bf16.msra.mxu0 %v2727
    %3082 = vmatpush.bf16.msra.mxu0 %v2725
    %3083 = vmatpush.bf16.msra.mxu0 %v2723
    %3084 = vmatpush.bf16.msra.mxu0 %v2721
    %3085 = vmatpush.bf16.msra.mxu0 %v2719
    %3086 = vmatpush.bf16.msra.mxu0 %v2717
    %3087 = vmatpush.bf16.msra.mxu0 %v2715
    %3088 = vmatmul.bf16.gmra.mxu0 %v2173
    %v3089 = vpop.f32.mrf.mxu0
    %v3090 = vadd.f32 %v3076, %v3089
    %v3091 = vpop.f32.mrf.mxu0
    %v3092 = vadd.f32 %v3078, %v3091
    %3093 = vdwg.mxu0
    %3094 = vmatpush.bf16.msra.mxu0 %v2745
    %3095 = vmatpush.bf16.msra.mxu0 %v2743
    %3096 = vmatpush.bf16.msra.mxu0 %v2741
    %3097 = vmatpush.bf16.msra.mxu0 %v2739
    %3098 = vmatpush.bf16.msra.mxu0 %v2737
    %3099 = vmatpush.bf16.msra.mxu0 %v2735
    %3100 = vmatpush.bf16.msra.mxu0 %v2733
    %3101 = vmatpush.bf16.msra.mxu0 %v2731
    %3102 = vmatmul.bf16.gmra.mxu0 %v2174
    %v3103 = vpop.f32.mrf.mxu0
    %v3104 = vadd.f32 %v3090, %v3103
    %v3105 = vpop.f32.mrf.mxu0
    %v3106 = vadd.f32 %v3092, %v3105
    %3107 = vdwg.mxu0
    %3108 = vmatpush.bf16.msra.mxu0 %v2761
    %3109 = vmatpush.bf16.msra.mxu0 %v2759
    %3110 = vmatpush.bf16.msra.mxu0 %v2757
    %3111 = vmatpush.bf16.msra.mxu0 %v2755
    %3112 = vmatpush.bf16.msra.mxu0 %v2753
    %3113 = vmatpush.bf16.msra.mxu0 %v2751
    %3114 = vmatpush.bf16.msra.mxu0 %v2749
    %3115 = vmatpush.bf16.msra.mxu0 %v2747
    %3116 = vmatmul.bf16.gmra.mxu0 %v2175
    %v3117 = vpop.f32.mrf.mxu0
    %v3118 = vadd.f32 %v3104, %v3117
    %v3119 = vpop.f32.mrf.mxu0
    %v3120 = vadd.f32 %v3106, %v3119
    %3121 = vdwg.mxu0
    %3122 = vmatpush.bf16.msra.mxu0 %v2777
    %3123 = vmatpush.bf16.msra.mxu0 %v2775
    %3124 = vmatpush.bf16.msra.mxu0 %v2773
    %3125 = vmatpush.bf16.msra.mxu0 %v2771
    %3126 = vmatpush.bf16.msra.mxu0 %v2769
    %3127 = vmatpush.bf16.msra.mxu0 %v2767
    %3128 = vmatpush.bf16.msra.mxu0 %v2765
    %3129 = vmatpush.bf16.msra.mxu0 %v2763
    %3130 = vmatmul.bf16.gmra.mxu0 %v2176
    %v3131 = vpop.f32.mrf.mxu0
    %v3132 = vadd.f32 %v3118, %v3131
    %v3133 = vpop.f32.mrf.mxu0
    %v3134 = vadd.f32 %v3120, %v3133
    %3135 = vdwg.mxu0
    %3136 = vmatpush.bf16.msra.mxu0 %v2793
    %3137 = vmatpush.bf16.msra.mxu0 %v2791
    %3138 = vmatpush.bf16.msra.mxu0 %v2789
    %3139 = vmatpush.bf16.msra.mxu0 %v2787
    %3140 = vmatpush.bf16.msra.mxu0 %v2785
    %3141 = vmatpush.bf16.msra.mxu0 %v2783
    %3142 = vmatpush.bf16.msra.mxu0 %v2781
    %3143 = vmatpush.bf16.msra.mxu0 %v2779
    %3144 = vmatmul.bf16.gmra.mxu0 %v2177
    %v3145 = vpop.f32.mrf.mxu0
    %v3146 = vadd.f32 %v3132, %v3145
    %v3147 = vpop.f32.mrf.mxu0
    %v3148 = vadd.f32 %v3134, %v3147
    %3149 = vdwg.mxu0
    %3150 = vmatpush.bf16.msra.mxu0 %v2809
    %3151 = vmatpush.bf16.msra.mxu0 %v2807
    %3152 = vmatpush.bf16.msra.mxu0 %v2805
    %3153 = vmatpush.bf16.msra.mxu0 %v2803
    %3154 = vmatpush.bf16.msra.mxu0 %v2801
    %3155 = vmatpush.bf16.msra.mxu0 %v2799
    %3156 = vmatpush.bf16.msra.mxu0 %v2797
    %3157 = vmatpush.bf16.msra.mxu0 %v2795
    %3158 = vmatmul.bf16.gmra.mxu0 %v2178
    %v3159 = vpop.f32.mrf.mxu0
    %v3160 = vadd.f32 %v3146, %v3159
    %v3161 = vpop.f32.mrf.mxu0
    %v3162 = vadd.f32 %v3148, %v3161
    %3163 = vdwg.mxu0
    %3164 = vmatpush.bf16.msra.mxu0 %v2825
    %3165 = vmatpush.bf16.msra.mxu0 %v2823
    %3166 = vmatpush.bf16.msra.mxu0 %v2821
    %3167 = vmatpush.bf16.msra.mxu0 %v2819
    %3168 = vmatpush.bf16.msra.mxu0 %v2817
    %3169 = vmatpush.bf16.msra.mxu0 %v2815
    %3170 = vmatpush.bf16.msra.mxu0 %v2813
    %3171 = vmatpush.bf16.msra.mxu0 %v2811
    %3172 = vmatmul.bf16.gmra.mxu0 %v2179
    %v3173 = vpop.f32.mrf.mxu0
    %v3174 = vadd.f32 %v3160, %v3173
    %v3175 = vpop.f32.mrf.mxu0
    %v3176 = vadd.f32 %v3162, %v3175
    %3177 = vdwg.mxu0
    %v3178 = vpack.c.bf16 %v3062, %v3062
    %v3179 = vpack.c.bf16 %v3174, %v3174
    %3180 = vmatpush.bf16.xpose.msra.mxu0 0
    %3181 = vmatpush.bf16.xpose.msra.mxu0 0
    %3182 = vmatpush.bf16.xpose.msra.mxu0 0
    %3183 = vmatpush.bf16.xpose.msra.mxu0 0
    %3184 = vmatpush.bf16.xpose.msra.mxu0 0
    %3185 = vmatpush.bf16.xpose.msra.mxu0 0
    %3186 = vmatpush.bf16.xpose.msra.mxu0 0
    %3187 = vmatpush.bf16.xpose.msra.mxu0 %v3179
    %3188 = vmatmul.bf16.gmra.mxu0 %v3178
    %v3189 = vpop.f32.mrf.mxu0
    %v3190 = vadd.f32 0.0, %v3189
    %v3191 = vpop.f32.mrf.mxu0
    %3192 = vdwg.mxu0
    %vm3193 = vcmask 64512
    %v3194 = vsel %vm3193, %v3190, 0.0
    %3195 = vst [vmem:[#allocation13] sm:$0xff] %v3194
    %v3196 = vpack.c.bf16 %v3064, %v3064
    %v3197 = vpack.c.bf16 %v3176, %v3176
    %3198 = vmatpush.bf16.xpose.msra.mxu0 0
    %3199 = vmatpush.bf16.xpose.msra.mxu0 0
    %3200 = vmatpush.bf16.xpose.msra.mxu0 0
    %3201 = vmatpush.bf16.xpose.msra.mxu0 0
    %3202 = vmatpush.bf16.xpose.msra.mxu0 0
    %3203 = vmatpush.bf16.xpose.msra.mxu0 0
    %3204 = vmatpush.bf16.xpose.msra.mxu0 0
    %3205 = vmatpush.bf16.xpose.msra.mxu0 %v3197
    %3206 = vmatmul.bf16.gmra.mxu0 %v3196
    %v3207 = vpop.f32.mrf.mxu0
    %v3208 = vadd.f32 0.0, %v3207
    %v3209 = vpop.f32.mrf.mxu0
    %3210 = vdwg.mxu0
    %v3211 = vsel %vm3193, %v3208, 0.0
    %s3212 = scalar_lea.vmem [#allocation13], 8
    %3213 = vst [vmem:[%s3212] sm:$0xff] %v3211
    // Predicated region
    $region54: #{tpu_custom_call.1} parent=1 // pred_check
      _
    $region55: #{tpu_custom_call.1} parent=1 // pred_check_branch
      %3215 = sbr.rel (0) target = $region57
    $region56: #{tpu_custom_call.1} parent=1 // pred_region
      %3217 = vsyncadd [#allocation4], 0
      %s3218 = sshll.u32 [#allocation13], 4
      %s3219 = int_to_ptr.vmem [resolvable:$true] %s3218
      %s3220 = sshll.u32 %s7, 4
      %s3221 = int_to_ptr.hbm [resolvable:$true] %s3220
      %3226 = dma.vmem_to_hbm [thread:$0]  %s3219, 256, %s3221, [#allocation4], 128, 128, 8
    $region57: #{tpu_custom_call.1} parent=1 // pred_fallthru
      _
    // Predicated region
    $region58: #{tpu_custom_call.1} parent=1 // pred_check
      _
    $region59: #{tpu_custom_call.1} parent=1 // pred_check_branch
      %3228 = sbr.rel (0) target = $region61
    $region60: #{tpu_custom_call.1} parent=1 // pred_region
      %3230 = dma.done [#allocation4], 256
    $region61: #{tpu_custom_call.1} parent=1 // pred_fallthru
      _
    %3231 = vsyncpa [#allocation3], 1
    %3232 = vsyncpa [#allocation6], 1
    %3233 = vsyncpa [#allocation9], 1
    %3234 = vsyncpa [#allocation12], 1
    %3235 = vsyncpa [#allocation4], 1

</llo_original>
